<compile_context>
chip_gen: v7x
topology: tpu7x:2x2x1
jax: 0.10.0
libtpu: 0.0.40
codegen_flags: <defaults>
</compile_context>

<pallas_src>
import functools

import jax
import jax.numpy as jnp
from jax import lax
from jax.experimental import pallas as pl
from jax.experimental.pallas import tpu as pltpu

LN_EPS = 1e-12


def _layernorm(x, gamma, beta):
    mean = jnp.mean(x, axis=-1, keepdims=True)
    var = jnp.mean(jnp.square(x - mean), axis=-1, keepdims=True)
    return (x - mean) * lax.rsqrt(var + LN_EPS) * gamma + beta


# ---------------------------------------------------------------------------
# Fused layer kernel.
# Grid = (batch, q_tile, head_group).  head_group is a reduction axis: each step
# handles a group of heads (q/k/v pre-projected in the wrapper) and accumulates its
# contribution to the attention output projection in a VMEM f32 scratch.  On the last
# group the kernel finishes the layer: bias + residual + LN, I-tiled FFN, residual LN.
# ---------------------------------------------------------------------------
def layer_kernel(x_ref, q_ref, k_ref, v_ref, wo_ref, bo_ref, g1_ref, b1_ref,
                 wi_ref, bi_ref, wf_ref, bf_ref, g2_ref, b2_ref,
                 out_ref, acc_ref, *, i_tile):
    g = pl.program_id(2)
    n_groups = pl.num_programs(2)

    q = q_ref[0]                                   # (hg, tq, dh) bf16 (scale folded in)
    k = k_ref[0]                                   # (hg, S,  dh) bf16
    v = v_ref[0]                                   # (hg, S,  dh) bf16

    # Batched over the head group: scores -> softmax -> context.
    s = jnp.einsum("htd,hsd->hts", q, k, preferred_element_type=jnp.float32)
    s = s - jnp.max(s, axis=-1, keepdims=True)
    p = jnp.exp(s)
    p = p * pl.reciprocal(jnp.sum(p, axis=-1, keepdims=True), approx=True)

    ctx = jnp.einsum("hts,hsd->htd", p.astype(jnp.bfloat16), v,
                     preferred_element_type=jnp.float32)           # (hg, tq, dh)

    # Attention output projection for this head group (batched over heads, then summed).
    # TODO(synk): flattening ctx to (tq, hg*dh) would widen the contraction to K=hg*dh;
    #             kept batched (K = dh per head) for robust Mosaic lowering.
    o_g = jnp.einsum("htd,hdk->htk", ctx.astype(jnp.bfloat16), wo_ref[0],
                     preferred_element_type=jnp.float32)           # (hg, tq, H)
    contrib = jnp.sum(o_g, axis=0)                                 # (tq, H)

    @pl.when(g == 0)
    def _first():
        acc_ref[...] = contrib          # direct write: no zero-fill + add on group 0

    @pl.when(g > 0)
    def _accum():
        acc_ref[...] += contrib

    @pl.when(g == n_groups - 1)
    def _finalize():
        xq = x_ref[0]                                              # (tq, H) f32 residual
        # BertSelfOutput: dense bias + residual + LayerNorm (dropout = identity at eval)
        attn = _layernorm(acc_ref[...] + bo_ref[...] + xq, g1_ref[...], b1_ref[...])
        attn_b = attn.astype(jnp.bfloat16)

        # BertIntermediate + BertOutput, tiled over the intermediate dim.
        inter = wi_ref.shape[1]
        n_i = inter // i_tile
        y = attn + bf_ref[...]          # residual + FFN output bias; dense accumulated
        for it in range(n_i):           # static unroll
            lo = it * i_tile
            h = jnp.dot(attn_b, wi_ref[:, lo:lo + i_tile],
                        preferred_element_type=jnp.float32) + bi_ref[:, lo:lo + i_tile]
            # TODO(synk): HF BERT default act is exact erf-GELU; tanh approximation is
            #             used here for portable Mosaic lowering (reference matches).
            h = jax.nn.gelu(h, approximate=True)
            y = y + jnp.dot(h.astype(jnp.bfloat16), wf_ref[lo:lo + i_tile, :],
                            preferred_element_type=jnp.float32)
        out_ref[0] = _layernorm(y, g2_ref[...], b2_ref[...]).astype(out_ref.dtype)


# ---------------------------------------------------------------------------
# Tile / group selection helpers.
# ---------------------------------------------------------------------------
def _pick_q_tile(S):
    # Multiples of 16 (safe sublane tiling for bf16 blocks) dividing S; prefer >= 2
    # q-tiles so the megacore-parallel axes always give both TensorCores work.
    for cand in (512, 256, 128, 64, 32, 16):
        if cand < S and S % cand == 0:
            return cand
    return S


def _pick_head_group(num_heads, dh):
    # Pack enough heads per grid step to feed a 256-wide MXU (v6e/v7x); must divide
    # num_heads.  (On v5e 128-wide would already suffice; extra packing is harmless.)
    hg = max(1, min(num_heads, 256 // max(dh, 1)))
    while num_heads % hg:
        hg -= 1
    return hg


def _pick_i_tile(I):
    for cand in (2048, 1536, 1024, 512, 384, 256, 128):
        if I % cand == 0:
            return cand
    return I


def _vmem_limit(B, S, H, I, tq, hg, dh, i_tile):
    """Explicit scoped-VMEM budget from the actual block + temporary footprint."""
    blocks = (2 * tq * H * 4                # residual block (double-buffered)
              + 2 * hg * tq * dh * 2        # q block
              + 2 * 2 * hg * S * dh * 2     # k, v blocks
              + 2 * hg * dh * H * 2         # wo block
              + (H * I + I * H) * 2         # wi, wf (single-buffered)
              + 2 * (6 * H + I) * 4         # biases / LN params
              + 2 * tq * H * 4              # output block
              + tq * H * 4)                 # accumulator scratch
    temps = (2 * hg * tq * S * 4            # scores + probs
             + 2 * hg * tq * dh * 4         # ctx
             + hg * tq * H * 4              # per-head projected outputs
             + 2 * tq * i_tile * 4          # FFN intermediate tile
             + 3 * tq * H * 4)              # attn / y temporaries
    est = 2 * (blocks + temps) + (4 << 20)
    return int(min(max(est, 32 << 20), 100 << 20))


# ---------------------------------------------------------------------------
# Per-layer parameter preparation (wrapper-side, once per layer).
# ---------------------------------------------------------------------------
def _prepare_layer(p, num_heads, hg):
    H = p["wq"].shape[0]
    dh = H // num_heads
    G = num_heads // hg
    scale = 1.0 / float(dh) ** 0.5
    # Fold 1/sqrt(dh) into Wq / bq; fuse Q/K/V weights into one (H, 3H) bf16 matrix.
    w_qkv = jnp.concatenate([p["wq"] * scale, p["wk"], p["wv"]], axis=1).astype(jnp.bfloat16)
    b_qkv = jnp.concatenate([p["bq"] * scale, p["bk"], p["bv"]], axis=1)        # f32
    wo = p["wo_attn"].reshape(num_heads, dh, H).reshape(G, hg, dh, H).astype(jnp.bfloat16)
    return {
        "w_qkv": w_qkv, "b_qkv": b_qkv, "wo": wo,
        "bo": p["bo_attn"], "ln1_g": p["ln1_g"], "ln1_b": p["ln1_b"],
        "wi": p["wi"].astype(jnp.bfloat16), "bi": p["bi"],
        "wf": p["wo_ffn"].astype(jnp.bfloat16), "bf": p["bo_ffn"],
        "ln2_g": p["ln2_g"], "ln2_b": p["ln2_b"],
    }


# ---------------------------------------------------------------------------
# One GatbertLayer: wrapper-side QKV pre-pass + fused attention/FFN pallas_call.
# ---------------------------------------------------------------------------
def gatbert_layer(x, pp, *, num_heads, hg, q_tile=None, vmem_limit_bytes=None):
    B, S, H = x.shape
    dh = H // num_heads
    G = num_heads // hg
    tq = _pick_q_tile(S) if q_tile is None else q_tile
    assert S % tq == 0
    nq = S // tq
    I = pp["wi"].shape[1]
    i_tile = _pick_i_tile(I)

    # --- QKV pre-pass: one wide (H, 3H) bf16 matmul per layer (plain XLA) so K/V are
    #     never recomputed per q-tile; head-split/transpose done here, not in-kernel.
    qkv = jnp.dot(x.astype(jnp.bfloat16), pp["w_qkv"],
                  preferred_element_type=jnp.float32) + pp["b_qkv"]            # (B,S,3H)
    q, k, v = jnp.split(qkv, 3, axis=-1)

    def to_groups(t):                       # (B,S,H) -> (B*G, hg, S, dh), bf16
        t = t.reshape(B, S, num_heads, dh).transpose(0, 2, 1, 3)
        return t.reshape(B * G, hg, S, dh).astype(jnp.bfloat16)

    qh, kh, vh = to_groups(q), to_groups(k), to_groups(v)

    def const_spec(shape, single_buffer=False):
        idx = lambda b, qi, g, _n=len(shape): (0,) * _n
        if single_buffer:
            try:
                # Constant-index blocks are never re-fetched: single buffering halves
                # their VMEM footprint (important on v7x's 64 MiB).
                return pl.BlockSpec(shape, idx, pipeline_mode=pl.Buffered(1))
            except Exception:  # pragma: no cover - fall back if Buffered unsupported
                pass
        return pl.BlockSpec(shape, idx)

    in_specs = [
        pl.BlockSpec((1, tq, H), lambda b, qi, g: (b, qi, 0)),                  # residual
        pl.BlockSpec((1, hg, tq, dh), lambda b, qi, g: (b * G + g, 0, qi, 0)),  # q
        pl.BlockSpec((1, hg, S, dh), lambda b, qi, g: (b * G + g, 0, 0, 0)),    # k
        pl.BlockSpec((1, hg, S, dh), lambda b, qi, g: (b * G + g, 0, 0, 0)),    # v
        pl.BlockSpec((1, hg, dh, H), lambda b, qi, g: (g, 0, 0, 0)),            # wo
        const_spec((1, H)), const_spec((1, H)), const_spec((1, H)),   # bo, ln1_g, ln1_b
        const_spec((H, I), single_buffer=True), const_spec((1, I)),   # wi, bi
        const_spec((I, H), single_buffer=True), const_spec((1, H)),   # wf, bf
        const_spec((1, H)), const_spec((1, H)),                       # ln2_g, ln2_b
    ]

    # Advisory cost estimate (kernel only; QKV projection happens outside).
    flops = int(4 * B * S * S * H            # scores + p@V
                + 2 * B * S * H * H          # attention output projection
                + 4 * B * S * H * I)         # FFN
    transcendentals = int(B * num_heads * S * S + B * S * I)
    bytes_accessed = int(2 * B * S * H * 4          # residual in + out (f32)
                         + B * S * H * 2            # q (bf16, read once)
                         + 2 * B * nq * S * H * 2   # k, v (re-read per q-tile)
                         + B * nq * H * H * 2       # wo (re-read per q-tile)
                         + 2 * H * I * 2            # wi, wf (bf16, fetched once)
                         + (6 * H + I) * 4)         # biases + LN params

    vmem_limit = (vmem_limit_bytes if vmem_limit_bytes is not None
                  else _vmem_limit(B, S, H, I, tq, hg, dh, i_tile))

    kern = functools.partial(layer_kernel, i_tile=i_tile)
    return pl.pallas_call(
        kern,
        out_shape=jax.ShapeDtypeStruct((B, S, H), x.dtype),
        grid=(B, nq, G),
        in_specs=in_specs,
        out_specs=pl.BlockSpec((1, tq, H), lambda b, qi, g: (b, qi, 0)),
        scratch_shapes=[pltpu.VMEM((tq, H), jnp.float32)],
        compiler_params=pltpu.CompilerParams(
            dimension_semantics=("parallel", "parallel", "arbitrary"),
            vmem_limit_bytes=vmem_limit),
        cost_estimate=pl.CostEstimate(flops=flops, transcendentals=transcendentals,
                                      bytes_accessed=bytes_accessed),
    )(x, qh, kh, vh,
      pp["wo"], pp["bo"], pp["ln1_g"], pp["ln1_b"],
      pp["wi"], pp["bi"], pp["wf"], pp["bf"], pp["ln2_g"], pp["ln2_b"])


def gatbert_encoder(node_states, edge_indices, params, *, num_heads,
                    node_type_ids=None, relation_states=None, q_tile=None,
                    vmem_limit_bytes=None):
    """Mirrors GatbertEncoder.forward."""
    if node_type_ids is None:
        node_type_ids = jnp.zeros(node_states.shape[:2], dtype=jnp.int32)
    del edge_indices, node_type_ids  # see TODO(synk) at top of file
    H = node_states.shape[-1]
    assert H % num_heads == 0
    hg = _pick_head_group(num_heads, H // num_heads)
    x = node_states
    for layer_params in params:
        pp = _prepare_layer(layer_params, num_heads, hg)
        x = gatbert_layer(x, pp, num_heads=num_heads, hg=hg, q_tile=q_tile,
                          vmem_limit_bytes=vmem_limit_bytes)
        # relation_states stays None -> rel_proj skipped (matches reference forward)
    return x, relation_states


# ---------------------------------------------------------------------------
# Deterministic parameter init (BERT-style: N(0, 0.02), zero bias, LN gamma=1/beta=0)
# ---------------------------------------------------------------------------
def init_params(key, num_layers, hidden, intermediate):
    params = []
    for _ in range(num_layers):
        key, *ks = jax.random.split(key, 7)
        params.append({
            "wq": jax.random.normal(ks[0], (hidden, hidden), jnp.float32) * 0.02,
            "bq": jnp.zeros((1, hidden), jnp.float32),
            "wk": jax.random.normal(ks[1], (hidden, hidden), jnp.float32) * 0.02,
            "bk": jnp.zeros((1, hidden), jnp.float32),
            "wv": jax.random.normal(ks[2], (hidden, hidden), jnp.float32) * 0.02,
            "bv": jnp.zeros((1, hidden), jnp.float32),
            "wo_attn": jax.random.normal(ks[3], (hidden, hidden), jnp.float32) * 0.02,
            "bo_attn": jnp.zeros((1, hidden), jnp.float32),
            "ln1_g": jnp.ones((1, hidden), jnp.float32),
            "ln1_b": jnp.zeros((1, hidden), jnp.float32),
            "wi": jax.random.normal(ks[4], (hidden, intermediate), jnp.float32) * 0.02,
            "bi": jnp.zeros((1, intermediate), jnp.float32),
            "wo_ffn": jax.random.normal(ks[5], (intermediate, hidden), jnp.float32) * 0.02,
            "bo_ffn": jnp.zeros((1, hidden), jnp.float32),
            "ln2_g": jnp.ones((1, hidden), jnp.float32),
            "ln2_b": jnp.zeros((1, hidden), jnp.float32),
        })
    return params


# ---------------------------------------------------------------------------
# Pure-JAX f32 reference (same math, no Pallas) for a sanity comparison.
# ---------------------------------------------------------------------------
def _reference(node_states, params, num_heads):
    x = node_states
    for p in params:
        B, S, H = x.shape
        dh = H // num_heads
        q = x @ p["wq"] + p["bq"]
        k = x @ p["wk"] + p["bk"]
        v = x @ p["wv"] + p["bv"]

        def split(t):
            return t.reshape(B, S, num_heads, dh).transpose(0, 2, 1, 3)

        qh, kh, vh = split(q), split(k), split(v)
        s = jnp.einsum("bhqd,bhkd->bhqk", qh, kh) / (dh ** 0.5)
        a = jax.nn.softmax(s, axis=-1)
        ctx = jnp.einsum("bhqk,bhkd->bhqd", a, vh).transpose(0, 2, 1, 3).reshape(B, S, H)
        attn = _layernorm(ctx @ p["wo_attn"] + p["bo_attn"] + x, p["ln1_g"], p["ln1_b"])
        h = jax.nn.gelu(attn @ p["wi"] + p["bi"], approximate=True)
        x = _layernorm(h @ p["wo_ffn"] + p["bo_ffn"] + attn, p["ln2_g"], p["ln2_b"])
    return x


if __name__ == "__main__":
    # Small lane-dense config: H multiple of 128; S chosen so tq=16 gives 2 q-tiles.
    BATCH, NODES, HIDDEN, HEADS, INTER, LAYERS = 2, 32, 128, 4, 512, 2

    key = jax.random.PRNGKey(0)
    k_x, k_p = jax.random.split(key)
    node_states = jax.random.normal(k_x, (BATCH, NODES, HIDDEN), jnp.float32)
    # dummy dense adjacency-style edge indices (unused by the kernels; see TODO)
    edge_indices = jnp.ones((BATCH, NODES, NODES), dtype=jnp.int32)
    params = init_params(k_p, LAYERS, HIDDEN, INTER)

    out_nodes, out_rel = gatbert_encoder(node_states, edge_indices, params,
                                         num_heads=HEADS)
    out_nodes = jax.block_until_ready(out_nodes)

    ref = _reference(node_states, params, HEADS)
    max_err = float(jnp.max(jnp.abs(out_nodes - ref)))

    assert out_nodes.shape == (BATCH, NODES, HIDDEN)
    assert out_rel is None
    assert bool(jnp.all(jnp.isfinite(out_nodes)))
    assert max_err < 5e-2, f"max abs err vs f32 reference = {max_err}"
    print("KERNEL_OK")
</pallas_src>

<mosaic_0001>
module attributes {stable_mosaic.version = 11 : i64} {
  func.func @layer_kernel(%arg0: i32, %arg1: i32, %arg2: i32, %arg3: memref<1x16x128xf32, #tpu.memory_space<vmem>>, %arg4: memref<1x4x16x32xbf16, #tpu.memory_space<vmem>>, %arg5: memref<1x4x32x32xbf16, #tpu.memory_space<vmem>>, %arg6: memref<1x4x32x32xbf16, #tpu.memory_space<vmem>>, %arg7: memref<1x4x32x128xbf16, #tpu.memory_space<vmem>>, %arg8: memref<1x128xf32, #tpu.memory_space<vmem>>, %arg9: memref<1x128xf32, #tpu.memory_space<vmem>>, %arg10: memref<1x128xf32, #tpu.memory_space<vmem>>, %arg11: memref<128x512xbf16, #tpu.memory_space<vmem>>, %arg12: memref<1x512xf32, #tpu.memory_space<vmem>>, %arg13: memref<512x128xbf16, #tpu.memory_space<vmem>>, %arg14: memref<1x128xf32, #tpu.memory_space<vmem>>, %arg15: memref<1x128xf32, #tpu.memory_space<vmem>>, %arg16: memref<1x128xf32, #tpu.memory_space<vmem>>, %arg17: memref<1x16x128xf32, #tpu.memory_space<vmem>>, %arg18: memref<16x128xf32, #tpu.memory_space<vmem>>) attributes {dimension_semantics = [#tpu.dimension_semantics<parallel>, #tpu.dimension_semantics<parallel>, #tpu.dimension_semantics<arbitrary>], iteration_bounds = array<i64: 2, 2, 1>, scalar_prefetch = 0 : i64, scratch_operands = 1 : i64, tpu.core_type = #tpu.core_type<tc>, window_params = [{transform_indices = @transform_0, window_bounds = array<i64: 1, 16, 128>}, {transform_indices = @transform_1, window_bounds = array<i64: 1, 4, 16, 32>}, {transform_indices = @transform_2, window_bounds = array<i64: 1, 4, 32, 32>}, {transform_indices = @transform_3, window_bounds = array<i64: 1, 4, 32, 32>}, {transform_indices = @transform_4, window_bounds = array<i64: 1, 4, 32, 128>}, {pipeline_mode = #tpu.pipeline_mode<synchronous>, transform_indices = @transform_5, window_bounds = array<i64: 1, 128>}, {pipeline_mode = #tpu.pipeline_mode<synchronous>, transform_indices = @transform_6, window_bounds = array<i64: 1, 128>}, {pipeline_mode = #tpu.pipeline_mode<synchronous>, transform_indices = @transform_7, window_bounds = array<i64: 1, 128>}, {pipeline_mode = #tpu.pipeline_mode<synchronous>, transform_indices = @transform_8, window_bounds = array<i64: 128, 512>}, {pipeline_mode = #tpu.pipeline_mode<synchronous>, transform_indices = @transform_9, window_bounds = array<i64: 1, 512>}, {pipeline_mode = #tpu.pipeline_mode<synchronous>, transform_indices = @transform_10, window_bounds = array<i64: 512, 128>}, {pipeline_mode = #tpu.pipeline_mode<synchronous>, transform_indices = @transform_11, window_bounds = array<i64: 1, 128>}, {pipeline_mode = #tpu.pipeline_mode<synchronous>, transform_indices = @transform_12, window_bounds = array<i64: 1, 128>}, {pipeline_mode = #tpu.pipeline_mode<synchronous>, transform_indices = @transform_13, window_bounds = array<i64: 1, 128>}, {transform_indices = @transform_14, window_bounds = array<i64: 1, 16, 128>}]} {
    %c0 = arith.constant 0 : index
    %c0_0 = arith.constant 0 : index
    %c0_1 = arith.constant 0 : index
    %c0_2 = arith.constant 0 : index
    %0 = vector.load %arg4[%c0, %c0_0, %c0_1, %c0_2] : memref<1x4x16x32xbf16, #tpu.memory_space<vmem>>, vector<1x4x16x32xbf16>
    %1 = vector.shape_cast %0 : vector<1x4x16x32xbf16> to vector<4x16x32xbf16>
    %c0_3 = arith.constant 0 : index
    %c0_4 = arith.constant 0 : index
    %c0_5 = arith.constant 0 : index
    %c0_6 = arith.constant 0 : index
    %2 = vector.load %arg5[%c0_3, %c0_4, %c0_5, %c0_6] : memref<1x4x32x32xbf16, #tpu.memory_space<vmem>>, vector<1x4x32x32xbf16>
    %3 = vector.shape_cast %2 : vector<1x4x32x32xbf16> to vector<4x32x32xbf16>
    %c0_7 = arith.constant 0 : index
    %c0_8 = arith.constant 0 : index
    %c0_9 = arith.constant 0 : index
    %c0_10 = arith.constant 0 : index
    %4 = vector.load %arg6[%c0_7, %c0_8, %c0_9, %c0_10] : memref<1x4x32x32xbf16, #tpu.memory_space<vmem>>, vector<1x4x32x32xbf16>
    %5 = vector.shape_cast %4 : vector<1x4x32x32xbf16> to vector<4x32x32xbf16>
    "tpu.trace_start"() <{level = 10 : i32, message = "htd,hsd->hts"}> : () -> ()
    %cst = arith.constant dense<0.000000e+00> : vector<4x16x32xf32>
    %6 = tpu.matmul %1, %3, %cst {dimension_numbers = #tpu.dot_dimension_numbers<[2], [2], [1], [1], [0, 0, 0, 1, 1, 1], [0], [0]>} : vector<4x16x32xbf16>, vector<4x32x32xbf16>, vector<4x16x32xf32> -> vector<4x16x32xf32>
    "tpu.trace_stop"() : () -> ()
    %cst_11 = arith.constant dense<0xFF800000> : vector<4x16xf32>
    %7 = vector.multi_reduction <maximumf>, %6, %cst_11 [2] : vector<4x16x32xf32> to vector<4x16xf32>
    %8 = vector.shape_cast %7 : vector<4x16xf32> to vector<4x16x1xf32>
    %9 = vector.broadcast %8 : vector<4x16x1xf32> to vector<4x16x32xf32>
    %10 = arith.subf %6, %9 : vector<4x16x32xf32>
    %11 = math.exp %10 : vector<4x16x32xf32>
    %cst_12 = arith.constant dense<0.000000e+00> : vector<4x16xf32>
    %12 = vector.multi_reduction <add>, %11, %cst_12 [2] : vector<4x16x32xf32> to vector<4x16xf32>
    %13 = vector.shape_cast %12 : vector<4x16xf32> to vector<4x16x1xf32>
    %14 = tpu.reciprocal %13 {approx = true} : vector<4x16x1xf32> -> vector<4x16x1xf32>
    %15 = vector.broadcast %14 : vector<4x16x1xf32> to vector<4x16x32xf32>
    %16 = arith.mulf %11, %15 : vector<4x16x32xf32>
    %17 = arith.truncf %16 : vector<4x16x32xf32> to vector<4x16x32xbf16>
    "tpu.trace_start"() <{level = 10 : i32, message = "hts,hsd->htd"}> : () -> ()
    %cst_13 = arith.constant dense<0.000000e+00> : vector<4x16x32xf32>
    %18 = tpu.matmul %17, %5, %cst_13 {dimension_numbers = #tpu.dot_dimension_numbers<[2], [1], [1], [2], [0, 0, 0, 1, 1, 2], [0], [0]>} : vector<4x16x32xbf16>, vector<4x32x32xbf16>, vector<4x16x32xf32> -> vector<4x16x32xf32>
    "tpu.trace_stop"() : () -> ()
    %19 = arith.truncf %18 : vector<4x16x32xf32> to vector<4x16x32xbf16>
    %c0_14 = arith.constant 0 : index
    %c0_15 = arith.constant 0 : index
    %c0_16 = arith.constant 0 : index
    %c0_17 = arith.constant 0 : index
    %20 = vector.load %arg7[%c0_14, %c0_15, %c0_16, %c0_17] : memref<1x4x32x128xbf16, #tpu.memory_space<vmem>>, vector<1x4x32x128xbf16>
    %21 = vector.shape_cast %20 : vector<1x4x32x128xbf16> to vector<4x32x128xbf16>
    "tpu.trace_start"() <{level = 10 : i32, message = "htd,hdk->htk"}> : () -> ()
    %cst_18 = arith.constant dense<0.000000e+00> : vector<4x16x128xf32>
    %22 = tpu.matmul %19, %21, %cst_18 {dimension_numbers = #tpu.dot_dimension_numbers<[2], [1], [1], [2], [0, 0, 0, 1, 1, 2], [0], [0]>} : vector<4x16x32xbf16>, vector<4x32x128xbf16>, vector<4x16x128xf32> -> vector<4x16x128xf32>
    "tpu.trace_stop"() : () -> ()
    %cst_19 = arith.constant dense<0.000000e+00> : vector<16x128xf32>
    %23 = vector.multi_reduction <add>, %22, %cst_19 [0] : vector<4x16x128xf32> to vector<16x128xf32>
    %c0_i32 = arith.constant 0 : i32
    %24 = arith.cmpi eq, %arg2, %c0_i32 : i32
    %25 = arith.extui %24 : i1 to i32
    %c0_i32_20 = arith.constant 0 : i32
    %26 = arith.cmpi ne, %25, %c0_i32_20 : i32
    scf.if %26 {
      %c0_25 = arith.constant 0 : index
      %c0_26 = arith.constant 0 : index
      %33 = vector.load %arg18[%c0_25, %c0_26] : memref<16x128xf32, #tpu.memory_space<vmem>>, vector<16x128xf32>
      tpu.vector_store %arg18[%c0_25, %c0_26], %23 {strides = array<i32>} : memref<16x128xf32, #tpu.memory_space<vmem>>, vector<16x128xf32>,
    } else {
    }
    %c0_i32_21 = arith.constant 0 : i32
    %27 = arith.cmpi sgt, %arg2, %c0_i32_21 : i32
    %28 = arith.extui %27 : i1 to i32
    %c0_i32_22 = arith.constant 0 : i32
    %29 = arith.cmpi ne, %28, %c0_i32_22 : i32
    scf.if %29 {
      %c0_25 = arith.constant 0 : index
      %c0_26 = arith.constant 0 : index
      %33 = vector.load %arg18[%c0_25, %c0_26] : memref<16x128xf32, #tpu.memory_space<vmem>>, vector<16x128xf32>
      %34 = arith.addf %33, %23 : vector<16x128xf32>
      %c0_27 = arith.constant 0 : index
      %c0_28 = arith.constant 0 : index
      %35 = vector.load %arg18[%c0_27, %c0_28] : memref<16x128xf32, #tpu.memory_space<vmem>>, vector<16x128xf32>
      tpu.vector_store %arg18[%c0_27, %c0_28], %34 {strides = array<i32>} : memref<16x128xf32, #tpu.memory_space<vmem>>, vector<16x128xf32>,
    } else {
    }
    %c0_i32_23 = arith.constant 0 : i32
    %30 = arith.cmpi eq, %arg2, %c0_i32_23 : i32
    %31 = arith.extui %30 : i1 to i32
    %c0_i32_24 = arith.constant 0 : i32
    %32 = arith.cmpi ne, %31, %c0_i32_24 : i32
    scf.if %32 {
      %c0_25 = arith.constant 0 : index
      %c0_26 = arith.constant 0 : index
      %c0_27 = arith.constant 0 : index
      %33 = vector.load %arg3[%c0_25, %c0_26, %c0_27] : memref<1x16x128xf32, #tpu.memory_space<vmem>>, vector<1x16x128xf32>
      %34 = vector.shape_cast %33 : vector<1x16x128xf32> to vector<16x128xf32>
      %c0_28 = arith.constant 0 : index
      %c0_29 = arith.constant 0 : index
      %35 = vector.load %arg18[%c0_28, %c0_29] : memref<16x128xf32, #tpu.memory_space<vmem>>, vector<16x128xf32>
      %c0_30 = arith.constant 0 : index
      %c0_31 = arith.constant 0 : index
      %36 = vector.load %arg8[%c0_30, %c0_31] : memref<1x128xf32, #tpu.memory_space<vmem>>, vector<1x128xf32>
      %37 = vector.broadcast %36 : vector<1x128xf32> to vector<16x128xf32>
      %38 = arith.addf %35, %37 : vector<16x128xf32>
      %39 = arith.addf %38, %34 : vector<16x128xf32>
      %c0_32 = arith.constant 0 : index
      %c0_33 = arith.constant 0 : index
      %40 = vector.load %arg9[%c0_32, %c0_33] : memref<1x128xf32, #tpu.memory_space<vmem>>, vector<1x128xf32>
      %c0_34 = arith.constant 0 : index
      %c0_35 = arith.constant 0 : index
      %41 = vector.load %arg10[%c0_34, %c0_35] : memref<1x128xf32, #tpu.memory_space<vmem>>, vector<1x128xf32>
      %cst_36 = arith.constant dense<0.000000e+00> : vector<16xf32>
      %42 = vector.multi_reduction <add>, %39, %cst_36 [1] : vector<16x128xf32> to vector<16xf32>
      %43 = vector.shape_cast %42 : vector<16xf32> to vector<16x1xf32>
      %cst_37 = arith.constant 1.280000e+02 : f32
      %44 = vector.broadcast %cst_37 : f32 to vector<16x1xf32>
      %45 = arith.divf %43, %44 : vector<16x1xf32>
      %46 = vector.broadcast %45 : vector<16x1xf32> to vector<16x128xf32>
      %47 = arith.subf %39, %46 : vector<16x128xf32>
      %48 = arith.mulf %47, %47 : vector<16x128xf32>
      %cst_38 = arith.constant dense<0.000000e+00> : vector<16xf32>
      %49 = vector.multi_reduction <add>, %48, %cst_38 [1] : vector<16x128xf32> to vector<16xf32>
      %50 = vector.shape_cast %49 : vector<16xf32> to vector<16x1xf32>
      %cst_39 = arith.constant 1.280000e+02 : f32
      %51 = vector.broadcast %cst_39 : f32 to vector<16x1xf32>
      %52 = arith.divf %50, %51 : vector<16x1xf32>
      %53 = vector.broadcast %45 : vector<16x1xf32> to vector<16x128xf32>
      %54 = arith.subf %39, %53 : vector<16x128xf32>
      %cst_40 = arith.constant 9.99999996E-13 : f32
      %55 = vector.broadcast %cst_40 : f32 to vector<16x1xf32>
      %56 = arith.addf %52, %55 : vector<16x1xf32>
      %57 = math.rsqrt %56 : vector<16x1xf32>
      %58 = vector.broadcast %57 : vector<16x1xf32> to vector<16x128xf32>
      %59 = arith.mulf %54, %58 : vector<16x128xf32>
      %60 = vector.broadcast %40 : vector<1x128xf32> to vector<16x128xf32>
      %61 = arith.mulf %59, %60 : vector<16x128xf32>
      %62 = vector.broadcast %41 : vector<1x128xf32> to vector<16x128xf32>
      %63 = arith.addf %61, %62 : vector<16x128xf32>
      %64 = arith.truncf %63 : vector<16x128xf32> to vector<16x128xbf16>
      %c0_41 = arith.constant 0 : index
      %c0_42 = arith.constant 0 : index
      %65 = vector.load %arg14[%c0_41, %c0_42] : memref<1x128xf32, #tpu.memory_space<vmem>>, vector<1x128xf32>
      %66 = vector.broadcast %65 : vector<1x128xf32> to vector<16x128xf32>
      %67 = arith.addf %63, %66 : vector<16x128xf32>
      %c0_43 = arith.constant 0 : index
      %c0_44 = arith.constant 0 : index
      %68 = vector.load %arg11[%c0_43, %c0_44] : memref<128x512xbf16, #tpu.memory_space<vmem>>, vector<128x512xbf16>
      %cst_45 = arith.constant dense<0.000000e+00> : vector<16x512xf32>
      %69 = tpu.matmul %64, %68, %cst_45 {dimension_numbers = #tpu.dot_dimension_numbers<[1], [0], [0], [1], [0, 0, 1, 1], [], []>} : vector<16x128xbf16>, vector<128x512xbf16>, vector<16x512xf32> -> vector<16x512xf32>
      %c0_46 = arith.constant 0 : index
      %c0_47 = arith.constant 0 : index
      %70 = vector.load %arg12[%c0_46, %c0_47] : memref<1x512xf32, #tpu.memory_space<vmem>>, vector<1x512xf32>
      %71 = vector.broadcast %70 : vector<1x512xf32> to vector<16x512xf32>
      %72 = arith.addf %69, %71 : vector<16x512xf32>
      %73 = arith.mulf %72, %72 : vector<16x512xf32>
      %74 = arith.mulf %72, %73 : vector<16x512xf32>
      %cst_48 = arith.constant 4.471500e-02 : f32
      %75 = vector.broadcast %cst_48 : f32 to vector<16x512xf32>
      %76 = arith.mulf %75, %74 : vector<16x512xf32>
      %77 = arith.addf %72, %76 : vector<16x512xf32>
      %cst_49 = arith.constant 0.797884583 : f32
      %78 = vector.broadcast %cst_49 : f32 to vector<16x512xf32>
      %79 = arith.mulf %78, %77 : vector<16x512xf32>
      %80 = math.tanh %79 : vector<16x512xf32>
      %cst_50 = arith.constant 1.000000e+00 : f32
      %81 = vector.broadcast %cst_50 : f32 to vector<16x512xf32>
      %82 = arith.addf %81, %80 : vector<16x512xf32>
      %cst_51 = arith.constant 5.000000e-01 : f32
      %83 = vector.broadcast %cst_51 : f32 to vector<16x512xf32>
      %84 = arith.mulf %83, %82 : vector<16x512xf32>
      %85 = arith.mulf %72, %84 : vector<16x512xf32>
      %86 = arith.truncf %85 : vector<16x512xf32> to vector<16x512xbf16>
      %c0_52 = arith.constant 0 : index
      %c0_53 = arith.constant 0 : index
      %87 = vector.load %arg13[%c0_52, %c0_53] : memref<512x128xbf16, #tpu.memory_space<vmem>>, vector<512x128xbf16>
      %cst_54 = arith.constant dense<0.000000e+00> : vector<16x128xf32>
      %88 = tpu.matmul %86, %87, %cst_54 {dimension_numbers = #tpu.dot_dimension_numbers<[1], [0], [0], [1], [0, 0, 1, 1], [], []>} : vector<16x512xbf16>, vector<512x128xbf16>, vector<16x128xf32> -> vector<16x128xf32>
      %89 = arith.addf %67, %88 : vector<16x128xf32>
      %c0_55 = arith.constant 0 : index
      %c0_56 = arith.constant 0 : index
      %90 = vector.load %arg15[%c0_55, %c0_56] : memref<1x128xf32, #tpu.memory_space<vmem>>, vector<1x128xf32>
      %c0_57 = arith.constant 0 : index
      %c0_58 = arith.constant 0 : index
      %91 = vector.load %arg16[%c0_57, %c0_58] : memref<1x128xf32, #tpu.memory_space<vmem>>, vector<1x128xf32>
      %cst_59 = arith.constant dense<0.000000e+00> : vector<16xf32>
      %92 = vector.multi_reduction <add>, %89, %cst_59 [1] : vector<16x128xf32> to vector<16xf32>
      %93 = vector.shape_cast %92 : vector<16xf32> to vector<16x1xf32>
      %cst_60 = arith.constant 1.280000e+02 : f32
      %94 = vector.broadcast %cst_60 : f32 to vector<16x1xf32>
      %95 = arith.divf %93, %94 : vector<16x1xf32>
      %96 = vector.broadcast %95 : vector<16x1xf32> to vector<16x128xf32>
      %97 = arith.subf %89, %96 : vector<16x128xf32>
      %98 = arith.mulf %97, %97 : vector<16x128xf32>
      %cst_61 = arith.constant dense<0.000000e+00> : vector<16xf32>
      %99 = vector.multi_reduction <add>, %98, %cst_61 [1] : vector<16x128xf32> to vector<16xf32>
      %100 = vector.shape_cast %99 : vector<16xf32> to vector<16x1xf32>
      %cst_62 = arith.constant 1.280000e+02 : f32
      %101 = vector.broadcast %cst_62 : f32 to vector<16x1xf32>
      %102 = arith.divf %100, %101 : vector<16x1xf32>
      %103 = vector.broadcast %95 : vector<16x1xf32> to vector<16x128xf32>
      %104 = arith.subf %89, %103 : vector<16x128xf32>
      %cst_63 = arith.constant 9.99999996E-13 : f32
      %105 = vector.broadcast %cst_63 : f32 to vector<16x1xf32>
      %106 = arith.addf %102, %105 : vector<16x1xf32>
      %107 = math.rsqrt %106 : vector<16x1xf32>
      %108 = vector.broadcast %107 : vector<16x1xf32> to vector<16x128xf32>
      %109 = arith.mulf %104, %108 : vector<16x128xf32>
      %110 = vector.broadcast %90 : vector<1x128xf32> to vector<16x128xf32>
      %111 = arith.mulf %109, %110 : vector<16x128xf32>
      %112 = vector.broadcast %91 : vector<1x128xf32> to vector<16x128xf32>
      %113 = arith.addf %111, %112 : vector<16x128xf32>
      %c0_64 = arith.constant 0 : index
      %c0_65 = arith.constant 0 : index
      %c0_66 = arith.constant 0 : index
      %114 = vector.load %arg17[%c0_64, %c0_65, %c0_66] : memref<1x16x128xf32, #tpu.memory_space<vmem>>, vector<1x16x128xf32>
      %115 = vector.shape_cast %114 : vector<1x16x128xf32> to vector<16x128xf32>
      %116 = vector.shape_cast %113 : vector<16x128xf32> to vector<1x16x128xf32>
      tpu.vector_store %arg17[%c0_64, %c0_65, %c0_66], %116 {strides = array<i32>} : memref<1x16x128xf32, #tpu.memory_space<vmem>>, vector<1x16x128xf32>,
    } else {
    }
    return
  }
  func.func @transform_0(%arg0: i32, %arg1: i32, %arg2: i32) -> (i32, i32, i32) {
    %c0_i32 = arith.constant 0 : i32
    %c0_i32_0 = arith.constant 0 : i32
    return %arg0, %arg1, %c0_i32 : i32, i32, i32
  }
  func.func @transform_1(%arg0: i32, %arg1: i32, %arg2: i32) -> (i32, i32, i32, i32) {
    %c1_i32 = arith.constant 1 : i32
    %0 = arith.muli %arg0, %c1_i32 : i32
    %1 = arith.addi %0, %arg2 : i32
    %c0_i32 = arith.constant 0 : i32
    %c0_i32_0 = arith.constant 0 : i32
    %c0_i32_1 = arith.constant 0 : i32
    return %1, %c0_i32, %arg1, %c0_i32_0 : i32, i32, i32, i32
  }
  func.func @transform_2(%arg0: i32, %arg1: i32, %arg2: i32) -> (i32, i32, i32, i32) {
    %c1_i32 = arith.constant 1 : i32
    %0 = arith.muli %arg0, %c1_i32 : i32
    %1 = arith.addi %0, %arg2 : i32
    %c0_i32 = arith.constant 0 : i32
    %c0_i32_0 = arith.constant 0 : i32
    %c0_i32_1 = arith.constant 0 : i32
    %c0_i32_2 = arith.constant 0 : i32
    return %1, %c0_i32, %c0_i32_0, %c0_i32_1 : i32, i32, i32, i32
  }
  func.func @transform_3(%arg0: i32, %arg1: i32, %arg2: i32) -> (i32, i32, i32, i32) {
    %c1_i32 = arith.constant 1 : i32
    %0 = arith.muli %arg0, %c1_i32 : i32
    %1 = arith.addi %0, %arg2 : i32
    %c0_i32 = arith.constant 0 : i32
    %c0_i32_0 = arith.constant 0 : i32
    %c0_i32_1 = arith.constant 0 : i32
    %c0_i32_2 = arith.constant 0 : i32
    return %1, %c0_i32, %c0_i32_0, %c0_i32_1 : i32, i32, i32, i32
  }
  func.func @transform_4(%arg0: i32, %arg1: i32, %arg2: i32) -> (i32, i32, i32, i32) {
    %c0_i32 = arith.constant 0 : i32
    %c0_i32_0 = arith.constant 0 : i32
    %c0_i32_1 = arith.constant 0 : i32
    %c0_i32_2 = arith.constant 0 : i32
    return %arg2, %c0_i32, %c0_i32_0, %c0_i32_1 : i32, i32, i32, i32
  }
  func.func @transform_5(%arg0: i32, %arg1: i32, %arg2: i32) -> (i32, i32) {
    %c0_i32 = arith.constant 0 : i32
    %c0_i32_0 = arith.constant 0 : i32
    %c0_i32_1 = arith.constant 0 : i32
    return %c0_i32, %c0_i32_0 : i32, i32
  }
  func.func @transform_6(%arg0: i32, %arg1: i32, %arg2: i32) -> (i32, i32) {
    %c0_i32 = arith.constant 0 : i32
    %c0_i32_0 = arith.constant 0 : i32
    %c0_i32_1 = arith.constant 0 : i32
    return %c0_i32, %c0_i32_0 : i32, i32
  }
  func.func @transform_7(%arg0: i32, %arg1: i32, %arg2: i32) -> (i32, i32) {
    %c0_i32 = arith.constant 0 : i32
    %c0_i32_0 = arith.constant 0 : i32
    %c0_i32_1 = arith.constant 0 : i32
    return %c0_i32, %c0_i32_0 : i32, i32
  }
  func.func @transform_8(%arg0: i32, %arg1: i32, %arg2: i32) -> (i32, i32) {
    %c0_i32 = arith.constant 0 : i32
    %c0_i32_0 = arith.constant 0 : i32
    %c0_i32_1 = arith.constant 0 : i32
    return %c0_i32, %c0_i32_0 : i32, i32
  }
  func.func @transform_9(%arg0: i32, %arg1: i32, %arg2: i32) -> (i32, i32) {
    %c0_i32 = arith.constant 0 : i32
    %c0_i32_0 = arith.constant 0 : i32
    %c0_i32_1 = arith.constant 0 : i32
    return %c0_i32, %c0_i32_0 : i32, i32
  }
  func.func @transform_10(%arg0: i32, %arg1: i32, %arg2: i32) -> (i32, i32) {
    %c0_i32 = arith.constant 0 : i32
    %c0_i32_0 = arith.constant 0 : i32
    %c0_i32_1 = arith.constant 0 : i32
    return %c0_i32, %c0_i32_0 : i32, i32
  }
  func.func @transform_11(%arg0: i32, %arg1: i32, %arg2: i32) -> (i32, i32) {
    %c0_i32 = arith.constant 0 : i32
    %c0_i32_0 = arith.constant 0 : i32
    %c0_i32_1 = arith.constant 0 : i32
    return %c0_i32, %c0_i32_0 : i32, i32
  }
  func.func @transform_12(%arg0: i32, %arg1: i32, %arg2: i32) -> (i32, i32) {
    %c0_i32 = arith.constant 0 : i32
    %c0_i32_0 = arith.constant 0 : i32
    %c0_i32_1 = arith.constant 0 : i32
    return %c0_i32, %c0_i32_0 : i32, i32
  }
  func.func @transform_13(%arg0: i32, %arg1: i32, %arg2: i32) -> (i32, i32) {
    %c0_i32 = arith.constant 0 : i32
    %c0_i32_0 = arith.constant 0 : i32
    %c0_i32_1 = arith.constant 0 : i32
    return %c0_i32, %c0_i32_0 : i32, i32
  }
  func.func @transform_14(%arg0: i32, %arg1: i32, %arg2: i32) -> (i32, i32, i32) {
    %c0_i32 = arith.constant 0 : i32
    %c0_i32_0 = arith.constant 0 : i32
    return %arg0, %arg1, %c0_i32 : i32, i32, i32
  }
}

</mosaic_0001>

<llo_original>
// kernel: tpu_custom_call.1
$region0: #{tpu_custom_call.1}
  #allocation0 [shape = 'u32[]', space=smem, size = 0x4, offset = 0x4, fixed_abs, tag = 'smem constant byte address 0x4 - core index']
  #allocation1 [shape = 'u32[144,128]{1,0:T(1,128)}', space=vmem, size = 0x12000, scoped, tag = 'internal scratch']
  #allocation2 [shape = 'f32[16,128]{1,0:T(8,128)}', space=vmem, size = 0x2000, scoped, tag = 'scratch operand']
  #allocation16 [shape = 's32[]', space=sflag, size = 0x4, offset = 0, fixed_abs, tag = 'sflag constant byte address 0x0 - dummy sync flag']
  %s0 = inlined_call_operand.hbm [shape: f32[2,32,128], index: 0, kind: input, shape index: {}]
  %s1 = inlined_call_operand.hbm [shape: bf16[2,4,32,32], index: 1, kind: input, shape index: {}]
  %s2 = inlined_call_operand.hbm [shape: bf16[2,4,32,32], index: 2, kind: input, shape index: {}]
  %s3 = inlined_call_operand.hbm [shape: bf16[2,4,32,32], index: 3, kind: input, shape index: {}]
  %s4 = inlined_call_operand.hbm [shape: bf16[1,4,32,128], index: 4, kind: input, shape index: {}]
  %s5 = inlined_call_operand.vmem [shape: f32[1,128], index: 5, kind: input, shape index: {}]
  %s6 = inlined_call_operand.vmem [shape: f32[1,128], index: 6, kind: input, shape index: {}]
  %s7 = inlined_call_operand.vmem [shape: f32[1,128], index: 7, kind: input, shape index: {}]
  %s8 = inlined_call_operand.hbm [shape: bf16[128,512], index: 8, kind: input, shape index: {}]
  %s9 = inlined_call_operand.vmem [shape: f32[1,512], index: 9, kind: input, shape index: {}]
  %s10 = inlined_call_operand.hbm [shape: bf16[512,128], index: 10, kind: input, shape index: {}]
  %s11 = inlined_call_operand.vmem [shape: f32[1,128], index: 11, kind: input, shape index: {}]
  %s12 = inlined_call_operand.vmem [shape: f32[1,128], index: 12, kind: input, shape index: {}]
  %s13 = inlined_call_operand.vmem [shape: f32[1,128], index: 13, kind: input, shape index: {}]
  %s14 = inlined_call_operand.hbm [shape: f32[2,32,128], index: 14, kind: output, shape index: {}]
  %s15 = sld [smem:[#allocation0]]
  $region129: #{tpu_custom_call.1} parent=0
    _
  %s17 = ssub.s32 1, %s15
  %s18 = scalar_select 0, %s17, %s15
  $region1: #{tpu_custom_call.1} parent=0
    #allocation3 [shape = 'u8[16384]{0}', space=vmem, size = 0x4000, scoped, tag = 'input window, operand 0']
    #allocation4 [shape = 's32[2]{0}', space=sflag, size = 0x8, scoped, tag = 'scoped memory for tpu_custom_call.1']
    #allocation5 [shape = 's32[2]{0}', space=sflag, size = 0x8, scoped, tag = 'scoped memory for tpu_custom_call.1']
    #allocation6 [shape = 'u8[32768]{0}', space=vmem, size = 0x8000, scoped, tag = 'input window, operand 1']
    #allocation7 [shape = 's32[2]{0}', space=sflag, size = 0x8, scoped, tag = 'scoped memory for tpu_custom_call.1']
    #allocation8 [shape = 'u8[65536]{0}', space=vmem, size = 0x10000, scoped, tag = 'input window, operand 2']
    #allocation9 [shape = 'u8[65536]{0}', space=vmem, size = 0x10000, scoped, tag = 'input window, operand 3']
    #allocation10 [shape = 's32[2]{0}', space=sflag, size = 0x8, scoped, tag = 'scoped memory for tpu_custom_call.1']
    #allocation11 [shape = 'u8[32768]{0}', space=vmem, size = 0x8000, scoped, tag = 'input window, operand 4, single buffered']
    #allocation12 [shape = 'u8[131072]{0}', space=vmem, size = 0x20000, scoped, tag = 'input window, operand 8, single buffered']
    #allocation13 [shape = 's32[1]{0}', space=sflag, size = 0x4, scoped, tag = 'scoped memory for tpu_custom_call.1']
    #allocation14 [shape = 'u8[131072]{0}', space=vmem, size = 0x20000, scoped, tag = 'input window, operand 10, single buffered']
    #allocation15 [shape = 'u8[16384]{0}', space=vmem, size = 0x4000, scoped, tag = 'output window, operand 0']
    %19 = vsyncpa [#allocation4], 0
    %s20 = scalar_lea.sflag [#allocation4], 1
    %21 = vsyncpa %s20, 0
    %22 = vsyncpa [#allocation7], 0
    %s23 = scalar_lea.sflag [#allocation7], 1
    %24 = vsyncpa %s23, 0
    %25 = vsyncpa [#allocation10], 0
    %s26 = scalar_lea.sflag [#allocation10], 1
    %27 = vsyncpa %s26, 0
    %28 = vsyncpa [#allocation13], 0
    %29 = vsyncpa [#allocation5], 0
    %s30 = scalar_lea.sflag [#allocation5], 1
    %31 = vsyncpa %s30, 0
    loop: start=0, step=1, limit=6
    $region2: #{tpu_custom_call.1} parent=1 // loop_pre_header
      _
    $region3: #{tpu_custom_call.1} parent=1 // loop_header
      %s33 = sphi 0, %s37
      %p34 = scmp.ge.s32.totalorder %s33, 6
      %s40 = sphi 0, %s59
      %s41 = sphi 0, %s55
      %s42 = sphi 0, %s51
      %s43 = sphi 0, %s40
      %s44 = sphi 0, %s41
      %s45 = sphi 0, %s42
      %s46 = sphi 0, %s43
      %s47 = sphi 0, %s44
      %s48 = sphi 0, %s45
      %s64 = sphi 0, %s66
      %s67 = sphi 0, %s64
      %s68 = sphi 0, %s67
      %s84 = sphi 0, %s68
      %s94 = sphi 0, %s96
      %s97 = sphi 0, %s94
      %s98 = sphi 0, %s97
      %s114 = sphi 0, %s98
      %s122 = sphi 0, %s124
      %s125 = sphi 0, %s122
      %s126 = sphi 0, %s125
      %s142 = sphi 0, %s126
      %s150 = sphi 0, %s152
      %s153 = sphi 0, %s150
      %s154 = sphi 0, %s153
      %s170 = sphi 0, %s154
      %s176 = sphi 0, %s178
      %s179 = sphi 0, %s176
      %s180 = sphi 0, %s179
      %s196 = sphi 0, %s180
      %s200 = sphi 0, %s200
      %s202 = sphi 0, %s200
      %s203 = sphi 0, %s202
      %s217 = sphi 0, %s203
      %s221 = sphi 0, %s221
      %s223 = sphi 0, %s221
      %s224 = sphi 0, %s223
      %s238 = sphi 0, %s224
      %s242 = sphi 0, %s242
      %s244 = sphi 0, %s242
      %s245 = sphi 0, %s244
      %s259 = sphi 0, %s245
      %s263 = sphi 0, %s263
      %s265 = sphi 0, %s263
      %s266 = sphi 0, %s265
      %s280 = sphi 0, %s266
      %s284 = sphi 0, %s284
      %s286 = sphi 0, %s284
      %s287 = sphi 0, %s286
      %s301 = sphi 0, %s287
      %s305 = sphi 0, %s305
      %s307 = sphi 0, %s305
      %s308 = sphi 0, %s307
      %s322 = sphi 0, %s308
      %s326 = sphi 0, %s326
      %s328 = sphi 0, %s326
      %s329 = sphi 0, %s328
      %s343 = sphi 0, %s329
      %s347 = sphi 0, %s347
      %s349 = sphi 0, %s347
      %s350 = sphi 0, %s349
      %s364 = sphi 0, %s350
      %s368 = sphi 0, %s368
      %s370 = sphi 0, %s368
      %s371 = sphi 0, %s370
      %s385 = sphi 0, %s371
      %s393 = sphi 0, %s395
      %s396 = sphi 0, %s393
      %s397 = sphi 0, %s396
      %s413 = sphi 0, %s397
    $region4: #{tpu_custom_call.1} parent=1 // loop_header_branch
      %36 = sbr.rel (%p34) target = $region8
    $region5: #{tpu_custom_call.1} parent=1 // loop_body
      %s38 = ssub.s32 %s33, 1
      %s39 = ssub.s32 %s33, 2
      %s49 = sadd.s32 1, %s42
      %p50 = scmp.ge.s32.totalorder %s49, 1
      %s51 = scalar_select %p50, 0, %s49
      %s52 = sadd.s32 1, %s41
      %s53 = scalar_select %p50, %s52, %s41
      %p54 = scmp.ge.s32.totalorder %s53, 2
      %s55 = scalar_select %p54, 0, %s53
      %s56 = sadd.s32 1, %s40
      %s57 = scalar_select %p54, %s56, %s40
      %p58 = scmp.ge.s32.totalorder %s57, 2
      %s59 = scalar_select %p58, 0, %s57
      %s60 = ssub.s32 %s40, %s59
      %s61 = ssub.s32 %s41, %s55
      %s62 = sor.u32 %s60, %s61
      %p63 = scmp.eq.s32.totalorder %s62, 0
      %s65 = sadd.s32 %s64, 1
      %s66 = scalar_select %p63, %s64, %s65
      %p69 = pneg %p63
      %p70 = scmp.eq.s32.totalorder %s33, 3
      %p71 = por %p69, %p70
      %p72 = scmp.ne.s32.totalorder %s64, %s67
      %p73 = scmp.eq.s32.totalorder %s33, 0
      %p74 = por %p72, %p73
      %p75 = scmp.ne.s32.totalorder %s64, %s67
      %p76 = scmp.eq.s32.totalorder %s38, 3
      %p77 = por %p75, %p76
      %p78 = scmp.ne.s32.totalorder %s67, %s68
      %p79 = scmp.eq.s32.totalorder %s38, 0
      %p80 = por %p78, %p79
      %p81 = scmp.ne.s32.totalorder %s67, %s68
      %p82 = scmp.eq.s32.totalorder %s39, 3
      %p83 = por %p81, %p82
      %p85 = scmp.ne.s32.totalorder %s68, %s84
      %p86 = scmp.eq.s32.totalorder %s39, 0
      %p87 = por %p85, %p86
      %s88 = sadd.s32 %s40, %s42
      %s89 = sadd.s32 %s59, %s51
      %s90 = ssub.s32 %s88, %s89
      %s91 = ssub.s32 %s41, %s55
      %s92 = sor.u32 %s90, %s91
      %p93 = scmp.eq.s32.totalorder %s92, 0
      %s95 = sadd.s32 %s94, 1
      %s96 = scalar_select %p93, %s94, %s95
      %p99 = pneg %p93
      %p100 = scmp.eq.s32.totalorder %s33, 3
      %p101 = por %p99, %p100
      %p102 = scmp.ne.s32.totalorder %s94, %s97
      %p103 = scmp.eq.s32.totalorder %s33, 0
      %p104 = por %p102, %p103
      %p105 = scmp.ne.s32.totalorder %s94, %s97
      %p106 = scmp.eq.s32.totalorder %s38, 3
      %p107 = por %p105, %p106
      %p108 = scmp.ne.s32.totalorder %s97, %s98
      %p109 = scmp.eq.s32.totalorder %s38, 0
      %p110 = por %p108, %p109
      %p111 = scmp.ne.s32.totalorder %s97, %s98
      %p112 = scmp.eq.s32.totalorder %s39, 3
      %p113 = por %p111, %p112
      %p115 = scmp.ne.s32.totalorder %s98, %s114
      %p116 = scmp.eq.s32.totalorder %s39, 0
      %p117 = por %p115, %p116
      %s118 = sadd.s32 %s40, %s42
      %s119 = sadd.s32 %s59, %s51
      %s120 = ssub.s32 %s118, %s119
      %p121 = scmp.eq.s32.totalorder %s120, 0
      %s123 = sadd.s32 %s122, 1
      %s124 = scalar_select %p121, %s122, %s123
      %p127 = pneg %p121
      %p128 = scmp.eq.s32.totalorder %s33, 3
      %p129 = por %p127, %p128
      %p130 = scmp.ne.s32.totalorder %s122, %s125
      %p131 = scmp.eq.s32.totalorder %s33, 0
      %p132 = por %p130, %p131
      %p133 = scmp.ne.s32.totalorder %s122, %s125
      %p134 = scmp.eq.s32.totalorder %s38, 3
      %p135 = por %p133, %p134
      %p136 = scmp.ne.s32.totalorder %s125, %s126
      %p137 = scmp.eq.s32.totalorder %s38, 0
      %p138 = por %p136, %p137
      %p139 = scmp.ne.s32.totalorder %s125, %s126
      %p140 = scmp.eq.s32.totalorder %s39, 3
      %p141 = por %p139, %p140
      %p143 = scmp.ne.s32.totalorder %s126, %s142
      %p144 = scmp.eq.s32.totalorder %s39, 0
      %p145 = por %p143, %p144
      %s146 = sadd.s32 %s40, %s42
      %s147 = sadd.s32 %s59, %s51
      %s148 = ssub.s32 %s146, %s147
      %p149 = scmp.eq.s32.totalorder %s148, 0
      %s151 = sadd.s32 %s150, 1
      %s152 = scalar_select %p149, %s150, %s151
      %p155 = pneg %p149
      %p156 = scmp.eq.s32.totalorder %s33, 3
      %p157 = por %p155, %p156
      %p158 = scmp.ne.s32.totalorder %s150, %s153
      %p159 = scmp.eq.s32.totalorder %s33, 0
      %p160 = por %p158, %p159
      %p161 = scmp.ne.s32.totalorder %s150, %s153
      %p162 = scmp.eq.s32.totalorder %s38, 3
      %p163 = por %p161, %p162
      %p164 = scmp.ne.s32.totalorder %s153, %s154
      %p165 = scmp.eq.s32.totalorder %s38, 0
      %p166 = por %p164, %p165
      %p167 = scmp.ne.s32.totalorder %s153, %s154
      %p168 = scmp.eq.s32.totalorder %s39, 3
      %p169 = por %p167, %p168
      %p171 = scmp.ne.s32.totalorder %s154, %s170
      %p172 = scmp.eq.s32.totalorder %s39, 0
      %p173 = por %p171, %p172
      %s174 = ssub.s32 %s42, %s51
      %p175 = scmp.eq.s32.totalorder %s174, 0
      %s177 = sadd.s32 %s176, 1
      %s178 = scalar_select %p175, %s176, %s177
      %p181 = pneg %p175
      %p182 = scmp.eq.s32.totalorder %s33, 3
      %p183 = por %p181, %p182
      %p184 = scmp.ne.s32.totalorder %s176, %s179
      %p185 = scmp.eq.s32.totalorder %s33, 0
      %p186 = por %p184, %p185
      %p187 = scmp.ne.s32.totalorder %s176, %s179
      %p188 = scmp.eq.s32.totalorder %s38, 3
      %p189 = por %p187, %p188
      %p190 = scmp.ne.s32.totalorder %s179, %s180
      %p191 = scmp.eq.s32.totalorder %s38, 0
      %p192 = por %p190, %p191
      %p193 = scmp.ne.s32.totalorder %s179, %s180
      %p194 = scmp.eq.s32.totalorder %s39, 3
      %p195 = por %p193, %p194
      %p197 = scmp.ne.s32.totalorder %s180, %s196
      %p198 = scmp.eq.s32.totalorder %s39, 0
      %p199 = por %p197, %p198
      %s201 = sadd.s32 %s200, 1
      %p204 = scmp.eq.s32.totalorder %s33, 3
      %p205 = scmp.ne.s32.totalorder %s200, %s202
      %p206 = scmp.eq.s32.totalorder %s33, 0
      %p207 = por %p205, %p206
      %p208 = scmp.ne.s32.totalorder %s200, %s202
      %p209 = scmp.eq.s32.totalorder %s38, 3
      %p210 = por %p208, %p209
      %p211 = scmp.ne.s32.totalorder %s202, %s203
      %p212 = scmp.eq.s32.totalorder %s38, 0
      %p213 = por %p211, %p212
      %p214 = scmp.ne.s32.totalorder %s202, %s203
      %p215 = scmp.eq.s32.totalorder %s39, 3
      %p216 = por %p214, %p215
      %p218 = scmp.ne.s32.totalorder %s203, %s217
      %p219 = scmp.eq.s32.totalorder %s39, 0
      %p220 = por %p218, %p219
      %s222 = sadd.s32 %s221, 1
      %p225 = scmp.eq.s32.totalorder %s33, 3
      %p226 = scmp.ne.s32.totalorder %s221, %s223
      %p227 = scmp.eq.s32.totalorder %s33, 0
      %p228 = por %p226, %p227
      %p229 = scmp.ne.s32.totalorder %s221, %s223
      %p230 = scmp.eq.s32.totalorder %s38, 3
      %p231 = por %p229, %p230
      %p232 = scmp.ne.s32.totalorder %s223, %s224
      %p233 = scmp.eq.s32.totalorder %s38, 0
      %p234 = por %p232, %p233
      %p235 = scmp.ne.s32.totalorder %s223, %s224
      %p236 = scmp.eq.s32.totalorder %s39, 3
      %p237 = por %p235, %p236
      %p239 = scmp.ne.s32.totalorder %s224, %s238
      %p240 = scmp.eq.s32.totalorder %s39, 0
      %p241 = por %p239, %p240
      %s243 = sadd.s32 %s242, 1
      %p246 = scmp.eq.s32.totalorder %s33, 3
      %p247 = scmp.ne.s32.totalorder %s242, %s244
      %p248 = scmp.eq.s32.totalorder %s33, 0
      %p249 = por %p247, %p248
      %p250 = scmp.ne.s32.totalorder %s242, %s244
      %p251 = scmp.eq.s32.totalorder %s38, 3
      %p252 = por %p250, %p251
      %p253 = scmp.ne.s32.totalorder %s244, %s245
      %p254 = scmp.eq.s32.totalorder %s38, 0
      %p255 = por %p253, %p254
      %p256 = scmp.ne.s32.totalorder %s244, %s245
      %p257 = scmp.eq.s32.totalorder %s39, 3
      %p258 = por %p256, %p257
      %p260 = scmp.ne.s32.totalorder %s245, %s259
      %p261 = scmp.eq.s32.totalorder %s39, 0
      %p262 = por %p260, %p261
      %s264 = sadd.s32 %s263, 1
      %p267 = scmp.eq.s32.totalorder %s33, 3
      %p268 = scmp.ne.s32.totalorder %s263, %s265
      %p269 = scmp.eq.s32.totalorder %s33, 0
      %p270 = por %p268, %p269
      %p271 = scmp.ne.s32.totalorder %s263, %s265
      %p272 = scmp.eq.s32.totalorder %s38, 3
      %p273 = por %p271, %p272
      %p274 = scmp.ne.s32.totalorder %s265, %s266
      %p275 = scmp.eq.s32.totalorder %s38, 0
      %p276 = por %p274, %p275
      %p277 = scmp.ne.s32.totalorder %s265, %s266
      %p278 = scmp.eq.s32.totalorder %s39, 3
      %p279 = por %p277, %p278
      %p281 = scmp.ne.s32.totalorder %s266, %s280
      %p282 = scmp.eq.s32.totalorder %s39, 0
      %p283 = por %p281, %p282
      %s285 = sadd.s32 %s284, 1
      %p288 = scmp.eq.s32.totalorder %s33, 3
      %p289 = scmp.ne.s32.totalorder %s284, %s286
      %p290 = scmp.eq.s32.totalorder %s33, 0
      %p291 = por %p289, %p290
      %p292 = scmp.ne.s32.totalorder %s284, %s286
      %p293 = scmp.eq.s32.totalorder %s38, 3
      %p294 = por %p292, %p293
      %p295 = scmp.ne.s32.totalorder %s286, %s287
      %p296 = scmp.eq.s32.totalorder %s38, 0
      %p297 = por %p295, %p296
      %p298 = scmp.ne.s32.totalorder %s286, %s287
      %p299 = scmp.eq.s32.totalorder %s39, 3
      %p300 = por %p298, %p299
      %p302 = scmp.ne.s32.totalorder %s287, %s301
      %p303 = scmp.eq.s32.totalorder %s39, 0
      %p304 = por %p302, %p303
      %s306 = sadd.s32 %s305, 1
      %p309 = scmp.eq.s32.totalorder %s33, 3
      %p310 = scmp.ne.s32.totalorder %s305, %s307
      %p311 = scmp.eq.s32.totalorder %s33, 0
      %p312 = por %p310, %p311
      %p313 = scmp.ne.s32.totalorder %s305, %s307
      %p314 = scmp.eq.s32.totalorder %s38, 3
      %p315 = por %p313, %p314
      %p316 = scmp.ne.s32.totalorder %s307, %s308
      %p317 = scmp.eq.s32.totalorder %s38, 0
      %p318 = por %p316, %p317
      %p319 = scmp.ne.s32.totalorder %s307, %s308
      %p320 = scmp.eq.s32.totalorder %s39, 3
      %p321 = por %p319, %p320
      %p323 = scmp.ne.s32.totalorder %s308, %s322
      %p324 = scmp.eq.s32.totalorder %s39, 0
      %p325 = por %p323, %p324
      %s327 = sadd.s32 %s326, 1
      %p330 = scmp.eq.s32.totalorder %s33, 3
      %p331 = scmp.ne.s32.totalorder %s326, %s328
      %p332 = scmp.eq.s32.totalorder %s33, 0
      %p333 = por %p331, %p332
      %p334 = scmp.ne.s32.totalorder %s326, %s328
      %p335 = scmp.eq.s32.totalorder %s38, 3
      %p336 = por %p334, %p335
      %p337 = scmp.ne.s32.totalorder %s328, %s329
      %p338 = scmp.eq.s32.totalorder %s38, 0
      %p339 = por %p337, %p338
      %p340 = scmp.ne.s32.totalorder %s328, %s329
      %p341 = scmp.eq.s32.totalorder %s39, 3
      %p342 = por %p340, %p341
      %p344 = scmp.ne.s32.totalorder %s329, %s343
      %p345 = scmp.eq.s32.totalorder %s39, 0
      %p346 = por %p344, %p345
      %s348 = sadd.s32 %s347, 1
      %p351 = scmp.eq.s32.totalorder %s33, 3
      %p352 = scmp.ne.s32.totalorder %s347, %s349
      %p353 = scmp.eq.s32.totalorder %s33, 0
      %p354 = por %p352, %p353
      %p355 = scmp.ne.s32.totalorder %s347, %s349
      %p356 = scmp.eq.s32.totalorder %s38, 3
      %p357 = por %p355, %p356
      %p358 = scmp.ne.s32.totalorder %s349, %s350
      %p359 = scmp.eq.s32.totalorder %s38, 0
      %p360 = por %p358, %p359
      %p361 = scmp.ne.s32.totalorder %s349, %s350
      %p362 = scmp.eq.s32.totalorder %s39, 3
      %p363 = por %p361, %p362
      %p365 = scmp.ne.s32.totalorder %s350, %s364
      %p366 = scmp.eq.s32.totalorder %s39, 0
      %p367 = por %p365, %p366
      %s369 = sadd.s32 %s368, 1
      %p372 = scmp.eq.s32.totalorder %s33, 3
      %p373 = scmp.ne.s32.totalorder %s368, %s370
      %p374 = scmp.eq.s32.totalorder %s33, 0
      %p375 = por %p373, %p374
      %p376 = scmp.ne.s32.totalorder %s368, %s370
      %p377 = scmp.eq.s32.totalorder %s38, 3
      %p378 = por %p376, %p377
      %p379 = scmp.ne.s32.totalorder %s370, %s371
      %p380 = scmp.eq.s32.totalorder %s38, 0
      %p381 = por %p379, %p380
      %p382 = scmp.ne.s32.totalorder %s370, %s371
      %p383 = scmp.eq.s32.totalorder %s39, 3
      %p384 = por %p382, %p383
      %p386 = scmp.ne.s32.totalorder %s371, %s385
      %p387 = scmp.eq.s32.totalorder %s39, 0
      %p388 = por %p386, %p387
      %s389 = ssub.s32 %s40, %s59
      %s390 = ssub.s32 %s41, %s55
      %s391 = sor.u32 %s389, %s390
      %p392 = scmp.eq.s32.totalorder %s391, 0
      %s394 = sadd.s32 %s393, 1
      %s395 = scalar_select %p392, %s393, %s394
      %p398 = pneg %p392
      %p399 = scmp.eq.s32.totalorder %s33, 3
      %p400 = por %p398, %p399
      %p401 = scmp.ne.s32.totalorder %s393, %s396
      %p402 = scmp.eq.s32.totalorder %s33, 0
      %p403 = por %p401, %p402
      %p404 = scmp.ne.s32.totalorder %s393, %s396
      %p405 = scmp.eq.s32.totalorder %s38, 3
      %p406 = por %p404, %p405
      %p407 = scmp.ne.s32.totalorder %s396, %s397
      %p408 = scmp.eq.s32.totalorder %s38, 0
      %p409 = por %p407, %p408
      %p410 = scmp.ne.s32.totalorder %s396, %s397
      %p411 = scmp.eq.s32.totalorder %s39, 3
      %p412 = por %p410, %p411
      %p414 = scmp.ne.s32.totalorder %s397, %s413
      %p415 = scmp.eq.s32.totalorder %s39, 0
      %p416 = por %p414, %p415
      %p417 = scmp.le.s32.totalorder 1, %s33
      %p418 = scmp.lt.s32.totalorder %s33, 5
      %p419 = pnand %p417, %p418
      %p420 = pneg %p419
      // Predicated region
      $region9: #{tpu_custom_call.1} parent=5 // pred_check
        _
      $region10: #{tpu_custom_call.1} parent=5 // pred_check_branch
        %422 = sbr.rel (%p419) target = $region12
      $region11: #{tpu_custom_call.1} parent=5 // pred_region
        %s423 = ssub.s32 %s33, 1
        // Predicated region
        $region13: #{tpu_custom_call.1} parent=11 // pred_check
          %p424 = pneg %p192
        $region14: #{tpu_custom_call.1} parent=11 // pred_check_branch
          %426 = sbr.rel (%p424) target = $region16
        $region15: #{tpu_custom_call.1} parent=11 // pred_region
          %s428 = ssub.s32 1024, 1024
          %429 = vsyncadd [#allocation10], %s428
          %s430 = smul.addr %s45, 16
          %s431 = smul.addr %s430, 64
          %s432 = scalar_lea.hbm %s4, %s431
          %s433 = sshll.u32 [#allocation11], 4
          %s434 = int_to_ptr.vmem [resolvable:$true] %s433
          %439 = dma.hbm_to_vmem [thread:$0]  %s432, 1024, %s434, [#allocation10], 64, 64, 4
        $region16: #{tpu_custom_call.1} parent=11 // pred_fallthru
          _
        // Predicated region
        $region17: #{tpu_custom_call.1} parent=11 // pred_check
          %p440 = pneg %p213
        $region18: #{tpu_custom_call.1} parent=11 // pred_check_branch
          %442 = sbr.rel (%p440) target = $region20
        $region19: #{tpu_custom_call.1} parent=11 // pred_region
          _
        $region20: #{tpu_custom_call.1} parent=11 // pred_fallthru
          _
        // Predicated region
        $region21: #{tpu_custom_call.1} parent=11 // pred_check
          %p443 = pneg %p234
        $region22: #{tpu_custom_call.1} parent=11 // pred_check_branch
          %445 = sbr.rel (%p443) target = $region24
        $region23: #{tpu_custom_call.1} parent=11 // pred_region
          _
        $region24: #{tpu_custom_call.1} parent=11 // pred_fallthru
          _
        // Predicated region
        $region25: #{tpu_custom_call.1} parent=11 // pred_check
          %p446 = pneg %p255
        $region26: #{tpu_custom_call.1} parent=11 // pred_check_branch
          %448 = sbr.rel (%p446) target = $region28
        $region27: #{tpu_custom_call.1} parent=11 // pred_region
          _
        $region28: #{tpu_custom_call.1} parent=11 // pred_fallthru
          _
        // Predicated region
        $region29: #{tpu_custom_call.1} parent=11 // pred_check
          %p449 = pneg %p276
        $region30: #{tpu_custom_call.1} parent=11 // pred_check_branch
          %451 = sbr.rel (%p449) target = $region32
        $region31: #{tpu_custom_call.1} parent=11 // pred_region
          %s453 = ssub.s32 4096, 4096
          %454 = vsyncadd [#allocation13], %s453
          %s455 = sshll.u32 [#allocation12], 4
          %s456 = int_to_ptr.vmem [resolvable:$true] %s455
          %461 = dma.hbm_to_vmem [thread:$0]  %s8, 4096, %s456, [#allocation13], 256, 256, 16
        $region32: #{tpu_custom_call.1} parent=11 // pred_fallthru
          _
        // Predicated region
        $region33: #{tpu_custom_call.1} parent=11 // pred_check
          %p462 = pneg %p297
        $region34: #{tpu_custom_call.1} parent=11 // pred_check_branch
          %464 = sbr.rel (%p462) target = $region36
        $region35: #{tpu_custom_call.1} parent=11 // pred_region
          _
        $region36: #{tpu_custom_call.1} parent=11 // pred_fallthru
          _
        // Predicated region
        $region37: #{tpu_custom_call.1} parent=11 // pred_check
          %p465 = pneg %p318
        $region38: #{tpu_custom_call.1} parent=11 // pred_check_branch
          %467 = sbr.rel (%p465) target = $region40
        $region39: #{tpu_custom_call.1} parent=11 // pred_region
          %s469 = ssub.s32 4096, 4096
          %470 = vsyncadd [#allocation13], %s469
          %s471 = sshll.u32 [#allocation14], 4
          %s472 = int_to_ptr.vmem [resolvable:$true] %s471
          %477 = dma.hbm_to_vmem [thread:$0]  %s10, 4096, %s472, [#allocation13], 64, 64, 4
        $region40: #{tpu_custom_call.1} parent=11 // pred_fallthru
          _
        // Predicated region
        $region41: #{tpu_custom_call.1} parent=11 // pred_check
          %p478 = pneg %p339
        $region42: #{tpu_custom_call.1} parent=11 // pred_check_branch
          %480 = sbr.rel (%p478) target = $region44
        $region43: #{tpu_custom_call.1} parent=11 // pred_region
          _
        $region44: #{tpu_custom_call.1} parent=11 // pred_fallthru
          _
        // Predicated region
        $region45: #{tpu_custom_call.1} parent=11 // pred_check
          %p481 = pneg %p360
        $region46: #{tpu_custom_call.1} parent=11 // pred_check_branch
          %483 = sbr.rel (%p481) target = $region48
        $region47: #{tpu_custom_call.1} parent=11 // pred_region
          _
        $region48: #{tpu_custom_call.1} parent=11 // pred_fallthru
          _
        // Predicated region
        $region49: #{tpu_custom_call.1} parent=11 // pred_check
          %p484 = pneg %p381
        $region50: #{tpu_custom_call.1} parent=11 // pred_check_branch
          %486 = sbr.rel (%p484) target = $region52
        $region51: #{tpu_custom_call.1} parent=11 // pred_region
          _
        $region52: #{tpu_custom_call.1} parent=11 // pred_fallthru
          _
      $region12: #{tpu_custom_call.1} parent=5 // pred_fallthru
        _
      %p487 = scmp.lt.s32.totalorder %s33, 4
      // Predicated region
      $region53: #{tpu_custom_call.1} parent=5 // pred_check
        %p488 = pneg %p487
      $region54: #{tpu_custom_call.1} parent=5 // pred_check_branch
        %490 = sbr.rel (%p488) target = $region56
      $region55: #{tpu_custom_call.1} parent=5 // pred_region
        // Predicated region
        $region57: #{tpu_custom_call.1} parent=55 // pred_check
          %p491 = pneg %p74
        $region58: #{tpu_custom_call.1} parent=55 // pred_check_branch
          %493 = sbr.rel (%p491) target = $region60
        $region59: #{tpu_custom_call.1} parent=55 // pred_region
          %s494 = sand.u32 %s64, 1
          %s495 = scalar_lea.sflag [#allocation4], %s494
          %s496 = sand.u32 %s64, 1
          %s497 = smul.addr %s496, 16
          %s498 = scalar_lea.vmem [#allocation3], %s497
          %s499 = smul.u32 2, %s41
          %s501 = ssub.s32 256, 256
          %502 = vsyncadd %s495, %s501
          %s503 = smul.addr %s40, 4
          %s504 = sadd.s32 %s499, %s503
          %s505 = smul.addr %s504, 128
          %s506 = scalar_lea.hbm %s0, %s505
          %s507 = sshll.u32 %s498, 4
          %s508 = int_to_ptr.vmem [resolvable:$true] %s507
          %513 = dma.hbm_to_vmem [thread:$0]  %s506, 256, %s508, %s495, 128, 128, 8
        $region60: #{tpu_custom_call.1} parent=55 // pred_fallthru
          _
        // Predicated region
        $region61: #{tpu_custom_call.1} parent=55 // pred_check
          %p514 = pneg %p104
        $region62: #{tpu_custom_call.1} parent=55 // pred_check_branch
          %516 = sbr.rel (%p514) target = $region64
        $region63: #{tpu_custom_call.1} parent=55 // pred_region
          #allocation17 [shape = 'u32[6]{0}', space=smem, size = 0x18, scoped, tag = 'DMA stride descriptor']
          %s517 = sand.u32 %s33, 1
          %s518 = scalar_lea.sflag [#allocation7], %s517
          %s519 = sand.u32 %s94, 1
          %s520 = smul.addr %s519, 32
          %s521 = scalar_lea.vmem [#allocation6], %s520
          %s522 = sadd.s32 %s40, %s42
          %s523 = smul.u32 2, %s41
          %s525 = ssub.s32 512, 512
          %526 = vsyncadd %s518, %s525
          %s527 = smul.addr %s522, 16
          %s528 = sadd.s32 %s523, %s527
          %s529 = smul.addr %s528, 64
          %s530 = scalar_lea.hbm %s1, %s529
          %s532 = sshll.u32 1, 14
          %s533 = sxor.u32 4294967295, %s532
          %s535 = sld [smem:[#allocation0]]
          %s536 = sadd.s32 2, %s535
          %s538 = sshll.u32 7, 26
          %s539 = sxor.u32 4294967295, %s538
          %s540 = sand.u32 0, %s539
          %s541 = sshll.u32 %s536, 26
          %s542 = sor.u32 %s540, %s541
          %s543 = sshll.u32 %s521, 4
          %s544 = int_to_ptr.vmem [resolvable:$true] %s543
          %550 = sst [smem:[#allocation17]] 256
          %s551 = scalar_lea.smem [#allocation17], 1
          %552 = sst [smem:[%s551]] 128
          %s553 = scalar_lea.smem [#allocation17], 2
          %554 = sst [smem:[%s553]] 2
          %s555 = scalar_lea.smem [#allocation17], 3
          %556 = sst [smem:[%s555]] 64
          %s557 = scalar_lea.smem [#allocation17], 4
          %558 = sst [smem:[%s557]] 64
          %s559 = scalar_lea.smem [#allocation17], 5
          %560 = sst [smem:[%s559]] 4
          %562 = dma.general %s530, 512, %s544, %s518, [#allocation16], [#allocation17], %s542, 0
        $region64: #{tpu_custom_call.1} parent=55 // pred_fallthru
          _
        // Predicated region
        $region65: #{tpu_custom_call.1} parent=55 // pred_check
          %p563 = pneg %p132
        $region66: #{tpu_custom_call.1} parent=55 // pred_check_branch
          %565 = sbr.rel (%p563) target = $region68
        $region67: #{tpu_custom_call.1} parent=55 // pred_region
          %s566 = sand.u32 %s33, 1
          %s567 = scalar_lea.sflag [#allocation7], %s566
          %s568 = sand.u32 %s122, 1
          %s569 = smul.addr %s568, 64
          %s570 = scalar_lea.vmem [#allocation8], %s569
          %s571 = sadd.s32 %s40, %s42
          %s573 = ssub.s32 1024, 1024
          %574 = vsyncadd %s567, %s573
          %s575 = smul.addr %s571, 16
          %s576 = smul.addr %s575, 64
          %s577 = scalar_lea.hbm %s2, %s576
          %s578 = sshll.u32 %s570, 4
          %s579 = int_to_ptr.vmem [resolvable:$true] %s578
          %584 = dma.hbm_to_vmem [thread:$0]  %s577, 1024, %s579, %s567, 64, 64, 4
        $region68: #{tpu_custom_call.1} parent=55 // pred_fallthru
          _
        // Predicated region
        $region69: #{tpu_custom_call.1} parent=55 // pred_check
          %p585 = pneg %p160
        $region70: #{tpu_custom_call.1} parent=55 // pred_check_branch
          %587 = sbr.rel (%p585) target = $region72
        $region71: #{tpu_custom_call.1} parent=55 // pred_region
          %s588 = sand.u32 %s33, 1
          %s589 = scalar_lea.sflag [#allocation10], %s588
          %s590 = sand.u32 %s150, 1
          %s591 = smul.addr %s590, 64
          %s592 = scalar_lea.vmem [#allocation9], %s591
          %s593 = sadd.s32 %s40, %s42
          %s595 = ssub.s32 1024, 1024
          %596 = vsyncadd %s589, %s595
          %s597 = smul.addr %s593, 16
          %s598 = smul.addr %s597, 64
          %s599 = scalar_lea.hbm %s3, %s598
          %s600 = sshll.u32 %s592, 4
          %s601 = int_to_ptr.vmem [resolvable:$true] %s600
          %606 = dma.hbm_to_vmem [thread:$0]  %s599, 1024, %s601, %s589, 64, 64, 4
        $region72: #{tpu_custom_call.1} parent=55 // pred_fallthru
          _
      $region56: #{tpu_custom_call.1} parent=5 // pred_fallthru
        _
      %p607 = scmp.le.s32.totalorder 1, %s33
      %p608 = scmp.lt.s32.totalorder %s33, 5
      %p609 = pnand %p607, %p608
      %p610 = pneg %p609
      // Predicated region
      $region73: #{tpu_custom_call.1} parent=5 // pred_check
        _
      $region74: #{tpu_custom_call.1} parent=5 // pred_check_branch
        %612 = sbr.rel (%p609) target = $region76
      $region75: #{tpu_custom_call.1} parent=5 // pred_region
        %s613 = ssub.s32 %s33, 1
        %s614 = sand.u32 %s67, 1
        %s615 = scalar_lea.sflag [#allocation4], %s614
        %s616 = sand.u32 %s67, 1
        %s617 = smul.addr %s616, 16
        %s618 = scalar_lea.vmem [#allocation3], %s617
        // Predicated region
        $region77: #{tpu_custom_call.1} parent=75 // pred_check
          %p619 = pneg %p80
        $region78: #{tpu_custom_call.1} parent=75 // pred_check_branch
          %621 = sbr.rel (%p619) target = $region80
        $region79: #{tpu_custom_call.1} parent=75 // pred_region
          %622 = dma.done %s615, 256
        $region80: #{tpu_custom_call.1} parent=75 // pred_fallthru
          _
        %s623 = sand.u32 %s38, 1
        %s624 = scalar_lea.sflag [#allocation7], %s623
        %s625 = sand.u32 %s97, 1
        %s626 = smul.addr %s625, 32
        %s627 = scalar_lea.vmem [#allocation6], %s626
        // Predicated region
        $region81: #{tpu_custom_call.1} parent=75 // pred_check
          %p628 = pneg %p110
        $region82: #{tpu_custom_call.1} parent=75 // pred_check_branch
          %630 = sbr.rel (%p628) target = $region84
        $region83: #{tpu_custom_call.1} parent=75 // pred_region
          %631 = dma.done %s624, 512
        $region84: #{tpu_custom_call.1} parent=75 // pred_fallthru
          _
        %s632 = sand.u32 %s38, 1
        %s633 = scalar_lea.sflag [#allocation7], %s632
        %s634 = sand.u32 %s125, 1
        %s635 = smul.addr %s634, 64
        %s636 = scalar_lea.vmem [#allocation8], %s635
        // Predicated region
        $region85: #{tpu_custom_call.1} parent=75 // pred_check
          %p637 = pneg %p138
        $region86: #{tpu_custom_call.1} parent=75 // pred_check_branch
          %639 = sbr.rel (%p637) target = $region88
        $region87: #{tpu_custom_call.1} parent=75 // pred_region
          %640 = dma.done %s633, 1024
        $region88: #{tpu_custom_call.1} parent=75 // pred_fallthru
          _
        %s641 = sand.u32 %s38, 1
        %s642 = scalar_lea.sflag [#allocation10], %s641
        %s643 = sand.u32 %s153, 1
        %s644 = smul.addr %s643, 64
        %s645 = scalar_lea.vmem [#allocation9], %s644
        // Predicated region
        $region89: #{tpu_custom_call.1} parent=75 // pred_check
          %p646 = pneg %p166
        $region90: #{tpu_custom_call.1} parent=75 // pred_check_branch
          %648 = sbr.rel (%p646) target = $region92
        $region91: #{tpu_custom_call.1} parent=75 // pred_region
          %649 = dma.done %s642, 1024
        $region92: #{tpu_custom_call.1} parent=75 // pred_fallthru
          _
        // Predicated region
        $region93: #{tpu_custom_call.1} parent=75 // pred_check
          %p650 = pneg %p192
        $region94: #{tpu_custom_call.1} parent=75 // pred_check_branch
          %652 = sbr.rel (%p650) target = $region96
        $region95: #{tpu_custom_call.1} parent=75 // pred_region
          %653 = dma.done [#allocation10], 1024
        $region96: #{tpu_custom_call.1} parent=75 // pred_fallthru
          _
        // Predicated region
        $region97: #{tpu_custom_call.1} parent=75 // pred_check
          %p654 = pneg %p276
        $region98: #{tpu_custom_call.1} parent=75 // pred_check_branch
          %656 = sbr.rel (%p654) target = $region100
        $region99: #{tpu_custom_call.1} parent=75 // pred_region
          %657 = dma.done [#allocation13], 4096
        $region100: #{tpu_custom_call.1} parent=75 // pred_fallthru
          _
        // Predicated region
        $region101: #{tpu_custom_call.1} parent=75 // pred_check
          %p658 = pneg %p318
        $region102: #{tpu_custom_call.1} parent=75 // pred_check_branch
          %660 = sbr.rel (%p658) target = $region104
        $region103: #{tpu_custom_call.1} parent=75 // pred_region
          %661 = dma.done [#allocation13], 4096
        $region104: #{tpu_custom_call.1} parent=75 // pred_fallthru
          _
        %s662 = sand.u32 %s67, 1
        %s663 = scalar_lea.sflag [#allocation4], %s662
        %s664 = sand.u32 %s67, 1
        %s665 = smul.addr %s664, 16
        %s666 = scalar_lea.vmem [#allocation3], %s665
        %p667 = pneg %p80
        %p668 = pneg %p77
        %s669 = sand.u32 %s38, 1
        %s670 = scalar_lea.sflag [#allocation7], %s669
        %s671 = sand.u32 %s97, 1
        %s672 = smul.addr %s671, 32
        %s673 = scalar_lea.vmem [#allocation6], %s672
        %p674 = pneg %p110
        %p675 = pneg %p107
        %s676 = sand.u32 %s38, 1
        %s677 = scalar_lea.sflag [#allocation7], %s676
        %s678 = sand.u32 %s125, 1
        %s679 = smul.addr %s678, 64
        %s680 = scalar_lea.vmem [#allocation8], %s679
        %p681 = pneg %p138
        %p682 = pneg %p135
        %s683 = sand.u32 %s38, 1
        %s684 = scalar_lea.sflag [#allocation10], %s683
        %s685 = sand.u32 %s153, 1
        %s686 = smul.addr %s685, 64
        %s687 = scalar_lea.vmem [#allocation9], %s686
        %p688 = pneg %p166
        %p689 = pneg %p163
        %p690 = pneg %p192
        %p691 = pneg %p189
        %p692 = pneg %p213
        %p693 = pneg %p210
        %p694 = pneg %p234
        %p695 = pneg %p231
        %p696 = pneg %p255
        %p697 = pneg %p252
        %p698 = pneg %p276
        %p699 = pneg %p273
        %p700 = pneg %p297
        %p701 = pneg %p294
        %p702 = pneg %p318
        %p703 = pneg %p315
        %p704 = pneg %p339
        %p705 = pneg %p336
        %p706 = pneg %p360
        %p707 = pneg %p357
        %p708 = pneg %p381
        %p709 = pneg %p378
        %p710 = pneg %p409
        %p711 = pneg %p406
        %s712 = sand.u32 %s396, 1
        %s713 = scalar_lea.sflag [#allocation5], %s712
        %s714 = sand.u32 %s396, 1
        %s715 = smul.addr %s714, 16
        %s716 = scalar_lea.vmem [#allocation15], %s715
        %s717 = smul.u32 2, %s44
        %s718 = sadd.s32 %s43, %s45
        %s719 = smul.u32 2, %s44
        %s720 = sadd.s32 %s43, %s45
        %s721 = sadd.s32 %s43, %s45
        %s722 = smul.u32 2, %s44
        %v724 = vld [vmem:[%s627] sm:$0xf]
        %v725 = vld [vmem:[%s627 + $0x4] sm:$0xf]
        %v726 = vld [vmem:[%s627 + $0x8] sm:$0xf]
        %v727 = vld [vmem:[%s627 + $0xc] sm:$0xf]
        %v728 = vld [vmem:[%s627 + $0x10] sm:$0xf]
        %v729 = vld [vmem:[%s627 + $0x14] sm:$0xf]
        %v730 = vld [vmem:[%s627 + $0x18] sm:$0xf]
        %v731 = vld [vmem:[%s627 + $0x1c] sm:$0xf]
        %v732 = vld [vmem:[%s636] sm:$0xf]
        %v733 = vld [vmem:[%s636 + $0x4] sm:$0xf]
        %v734 = vld [vmem:[%s636 + $0x8] sm:$0xf]
        %v735 = vld [vmem:[%s636 + $0xc] sm:$0xf]
        %v736 = vld [vmem:[%s636 + $0x10] sm:$0xf]
        %v737 = vld [vmem:[%s636 + $0x14] sm:$0xf]
        %v738 = vld [vmem:[%s636 + $0x18] sm:$0xf]
        %v739 = vld [vmem:[%s636 + $0x1c] sm:$0xf]
        %v740 = vld [vmem:[%s636 + $0x20] sm:$0xf]
        %v741 = vld [vmem:[%s636 + $0x24] sm:$0xf]
        %v742 = vld [vmem:[%s636 + $0x28] sm:$0xf]
        %v743 = vld [vmem:[%s636 + $0x2c] sm:$0xf]
        %v744 = vld [vmem:[%s636 + $0x30] sm:$0xf]
        %v745 = vld [vmem:[%s636 + $0x34] sm:$0xf]
        %v746 = vld [vmem:[%s636 + $0x38] sm:$0xf]
        %v747 = vld [vmem:[%s636 + $0x3c] sm:$0xf]
        %v748 = vld [vmem:[%s645] sm:$0xf]
        %v749 = vld [vmem:[%s645 + $0x4] sm:$0xf]
        %v750 = vld [vmem:[%s645 + $0x8] sm:$0xf]
        %v751 = vld [vmem:[%s645 + $0xc] sm:$0xf]
        %v752 = vld [vmem:[%s645 + $0x10] sm:$0xf]
        %v753 = vld [vmem:[%s645 + $0x14] sm:$0xf]
        %v754 = vld [vmem:[%s645 + $0x18] sm:$0xf]
        %v755 = vld [vmem:[%s645 + $0x1c] sm:$0xf]
        %v756 = vld [vmem:[%s645 + $0x20] sm:$0xf]
        %v757 = vld [vmem:[%s645 + $0x24] sm:$0xf]
        %v758 = vld [vmem:[%s645 + $0x28] sm:$0xf]
        %v759 = vld [vmem:[%s645 + $0x2c] sm:$0xf]
        %v760 = vld [vmem:[%s645 + $0x30] sm:$0xf]
        %v761 = vld [vmem:[%s645 + $0x34] sm:$0xf]
        %v762 = vld [vmem:[%s645 + $0x38] sm:$0xf]
        %v763 = vld [vmem:[%s645 + $0x3c] sm:$0xf]
        %v766 = vunpack.c.l.b16 %v724
        %v767 = vunpack.c.l.b16 %v725
        %v768 = vpack.c.b16 %v767, %v766
        %v773 = vunpack.c.l.b16 %v732
        %v774 = vunpack.c.l.b16 %v733
        %v775 = vunpack.c.l.b16 %v734
        %v776 = vunpack.c.l.b16 %v735
        %v777 = vpack.c.b16 %v774, %v773
        %v778 = vpack.c.b16 %v776, %v775
        %vm779 = vcmask 261120
        %v781 = vsel %vm779, %v768, 0
        %v784 = vsel %vm779, %v777, 0
        %v787 = vsel %vm779, %v778, 0
        %789 = vmatprep.subr.bf16.mxu0 0
        %790 = vmatpush1.bf16.xpose.msra.mxu0 %v784
        %791 = vmatprep.subr.bf16.mxu0 0
        %792 = vmatpush1.bf16.xpose.msra.mxu0 %v787
        %793 = vmatprep.subr.bf16.mxu0 0
        %794 = vmatpush1.bf16.xpose.msra.mxu0 0
        %795 = vmatprep.subr.bf16.mxu0 0
        %796 = vmatpush1.bf16.xpose.msra.mxu0 0
        %797 = vmatprep.subr.bf16.mxu0 0
        %798 = vmatpush1.bf16.xpose.msra.mxu0 0
        %799 = vmatprep.subr.bf16.mxu0 0
        %800 = vmatpush1.bf16.xpose.msra.mxu0 0
        %801 = vmatprep.subr.bf16.mxu0 0
        %802 = vmatpush1.bf16.xpose.msra.mxu0 0
        %803 = vmatprep.subr.bf16.mxu0 0
        %804 = vmatpush1.bf16.xpose.msra.mxu0 0
        %805 = vmatprep.subr.bf16.mxu0 0
        %806 = vmatpush1.bf16.xpose.msra.mxu0 0
        %807 = vmatprep.subr.bf16.mxu0 0
        %808 = vmatpush1.bf16.xpose.msra.mxu0 0
        %809 = vmatprep.subr.bf16.mxu0 0
        %810 = vmatpush1.bf16.xpose.msra.mxu0 0
        %811 = vmatprep.subr.bf16.mxu0 0
        %812 = vmatpush1.bf16.xpose.msra.mxu0 0
        %813 = vmatprep.subr.bf16.mxu0 0
        %814 = vmatpush1.bf16.xpose.msra.mxu0 0
        %815 = vmatprep.subr.bf16.mxu0 0
        %816 = vmatpush1.bf16.xpose.msra.mxu0 0
        %817 = vmatprep.subr.bf16.mxu0 0
        %818 = vmatpush1.bf16.xpose.msra.mxu0 0
        %819 = vmatprep.subr.bf16.mxu0 0
        %820 = vmatpush1.bf16.xpose.msra.mxu0 0
        %821 = vmatprep.mubr.bf16.mxu0 0
        %822 = vmatmul.mubr.bf16.gmra.mrb[0].mxu0 %v781
        %v823 = vpop.f32.mrb[0].mxu0
        %v824 = vadd.f32 0.0, %v823
        %v825 = vpop.f32.mrb[0].mxu0
        %v826 = vpop.f32.mrb[0].mxu0
        %v827 = vadd.f32 0.0, %v826
        %v828 = vpop.f32.mrb[0].mxu0
        %829 = vdwg.mxu0
        %v832 = vunpack.c.l.b16 %v726
        %v833 = vunpack.c.l.b16 %v727
        %v834 = vpack.c.b16 %v833, %v832
        %v839 = vunpack.c.l.b16 %v736
        %v840 = vunpack.c.l.b16 %v737
        %v841 = vunpack.c.l.b16 %v738
        %v842 = vunpack.c.l.b16 %v739
        %v843 = vpack.c.b16 %v840, %v839
        %v844 = vpack.c.b16 %v842, %v841
        %v846 = vsel %vm779, %v834, 0
        %v849 = vsel %vm779, %v843, 0
        %v852 = vsel %vm779, %v844, 0
        %854 = vmatprep.subr.bf16.mxu0 0
        %855 = vmatpush1.bf16.xpose.msra.mxu0 %v849
        %856 = vmatprep.subr.bf16.mxu0 0
        %857 = vmatpush1.bf16.xpose.msra.mxu0 %v852
        %858 = vmatprep.subr.bf16.mxu0 0
        %859 = vmatpush1.bf16.xpose.msra.mxu0 0
        %860 = vmatprep.subr.bf16.mxu0 0
        %861 = vmatpush1.bf16.xpose.msra.mxu0 0
        %862 = vmatprep.subr.bf16.mxu0 0
        %863 = vmatpush1.bf16.xpose.msra.mxu0 0
        %864 = vmatprep.subr.bf16.mxu0 0
        %865 = vmatpush1.bf16.xpose.msra.mxu0 0
        %866 = vmatprep.subr.bf16.mxu0 0
        %867 = vmatpush1.bf16.xpose.msra.mxu0 0
        %868 = vmatprep.subr.bf16.mxu0 0
        %869 = vmatpush1.bf16.xpose.msra.mxu0 0
        %870 = vmatprep.subr.bf16.mxu0 0
        %871 = vmatpush1.bf16.xpose.msra.mxu0 0
        %872 = vmatprep.subr.bf16.mxu0 0
        %873 = vmatpush1.bf16.xpose.msra.mxu0 0
        %874 = vmatprep.subr.bf16.mxu0 0
        %875 = vmatpush1.bf16.xpose.msra.mxu0 0
        %876 = vmatprep.subr.bf16.mxu0 0
        %877 = vmatpush1.bf16.xpose.msra.mxu0 0
        %878 = vmatprep.subr.bf16.mxu0 0
        %879 = vmatpush1.bf16.xpose.msra.mxu0 0
        %880 = vmatprep.subr.bf16.mxu0 0
        %881 = vmatpush1.bf16.xpose.msra.mxu0 0
        %882 = vmatprep.subr.bf16.mxu0 0
        %883 = vmatpush1.bf16.xpose.msra.mxu0 0
        %884 = vmatprep.subr.bf16.mxu0 0
        %885 = vmatpush1.bf16.xpose.msra.mxu0 0
        %886 = vmatprep.mubr.bf16.mxu0 0
        %887 = vmatmul.mubr.bf16.gmra.mrb[0].mxu0 %v846
        %v888 = vpop.f32.mrb[0].mxu0
        %v889 = vadd.f32 0.0, %v888
        %v890 = vpop.f32.mrb[0].mxu0
        %v891 = vpop.f32.mrb[0].mxu0
        %v892 = vadd.f32 0.0, %v891
        %v893 = vpop.f32.mrb[0].mxu0
        %894 = vdwg.mxu0
        %v897 = vunpack.c.l.b16 %v728
        %v898 = vunpack.c.l.b16 %v729
        %v899 = vpack.c.b16 %v898, %v897
        %v904 = vunpack.c.l.b16 %v740
        %v905 = vunpack.c.l.b16 %v741
        %v906 = vunpack.c.l.b16 %v742
        %v907 = vunpack.c.l.b16 %v743
        %v908 = vpack.c.b16 %v905, %v904
        %v909 = vpack.c.b16 %v907, %v906
        %v911 = vsel %vm779, %v899, 0
        %v914 = vsel %vm779, %v908, 0
        %v917 = vsel %vm779, %v909, 0
        %919 = vmatprep.subr.bf16.mxu0 0
        %920 = vmatpush1.bf16.xpose.msra.mxu0 %v914
        %921 = vmatprep.subr.bf16.mxu0 0
        %922 = vmatpush1.bf16.xpose.msra.mxu0 %v917
        %923 = vmatprep.subr.bf16.mxu0 0
        %924 = vmatpush1.bf16.xpose.msra.mxu0 0
        %925 = vmatprep.subr.bf16.mxu0 0
        %926 = vmatpush1.bf16.xpose.msra.mxu0 0
        %927 = vmatprep.subr.bf16.mxu0 0
        %928 = vmatpush1.bf16.xpose.msra.mxu0 0
        %929 = vmatprep.subr.bf16.mxu0 0
        %930 = vmatpush1.bf16.xpose.msra.mxu0 0
        %931 = vmatprep.subr.bf16.mxu0 0
        %932 = vmatpush1.bf16.xpose.msra.mxu0 0
        %933 = vmatprep.subr.bf16.mxu0 0
        %934 = vmatpush1.bf16.xpose.msra.mxu0 0
        %935 = vmatprep.subr.bf16.mxu0 0
        %936 = vmatpush1.bf16.xpose.msra.mxu0 0
        %937 = vmatprep.subr.bf16.mxu0 0
        %938 = vmatpush1.bf16.xpose.msra.mxu0 0
        %939 = vmatprep.subr.bf16.mxu0 0
        %940 = vmatpush1.bf16.xpose.msra.mxu0 0
        %941 = vmatprep.subr.bf16.mxu0 0
        %942 = vmatpush1.bf16.xpose.msra.mxu0 0
        %943 = vmatprep.subr.bf16.mxu0 0
        %944 = vmatpush1.bf16.xpose.msra.mxu0 0
        %945 = vmatprep.subr.bf16.mxu0 0
        %946 = vmatpush1.bf16.xpose.msra.mxu0 0
        %947 = vmatprep.subr.bf16.mxu0 0
        %948 = vmatpush1.bf16.xpose.msra.mxu0 0
        %949 = vmatprep.subr.bf16.mxu0 0
        %950 = vmatpush1.bf16.xpose.msra.mxu0 0
        %951 = vmatprep.mubr.bf16.mxu0 0
        %952 = vmatmul.mubr.bf16.gmra.mrb[0].mxu0 %v911
        %v953 = vpop.f32.mrb[0].mxu0
        %v954 = vadd.f32 0.0, %v953
        %v955 = vpop.f32.mrb[0].mxu0
        %v956 = vpop.f32.mrb[0].mxu0
        %v957 = vadd.f32 0.0, %v956
        %v958 = vpop.f32.mrb[0].mxu0
        %959 = vdwg.mxu0
        %v962 = vunpack.c.l.b16 %v730
        %v963 = vunpack.c.l.b16 %v731
        %v964 = vpack.c.b16 %v963, %v962
        %v969 = vunpack.c.l.b16 %v744
        %v970 = vunpack.c.l.b16 %v745
        %v971 = vunpack.c.l.b16 %v746
        %v972 = vunpack.c.l.b16 %v747
        %v973 = vpack.c.b16 %v970, %v969
        %v974 = vpack.c.b16 %v972, %v971
        %v976 = vsel %vm779, %v964, 0
        %v979 = vsel %vm779, %v973, 0
        %v982 = vsel %vm779, %v974, 0
        %984 = vmatprep.subr.bf16.mxu0 0
        %985 = vmatpush1.bf16.xpose.msra.mxu0 %v979
        %986 = vmatprep.subr.bf16.mxu0 0
        %987 = vmatpush1.bf16.xpose.msra.mxu0 %v982
        %988 = vmatprep.subr.bf16.mxu0 0
        %989 = vmatpush1.bf16.xpose.msra.mxu0 0
        %990 = vmatprep.subr.bf16.mxu0 0
        %991 = vmatpush1.bf16.xpose.msra.mxu0 0
        %992 = vmatprep.subr.bf16.mxu0 0
        %993 = vmatpush1.bf16.xpose.msra.mxu0 0
        %994 = vmatprep.subr.bf16.mxu0 0
        %995 = vmatpush1.bf16.xpose.msra.mxu0 0
        %996 = vmatprep.subr.bf16.mxu0 0
        %997 = vmatpush1.bf16.xpose.msra.mxu0 0
        %998 = vmatprep.subr.bf16.mxu0 0
        %999 = vmatpush1.bf16.xpose.msra.mxu0 0
        %1000 = vmatprep.subr.bf16.mxu0 0
        %1001 = vmatpush1.bf16.xpose.msra.mxu0 0
        %1002 = vmatprep.subr.bf16.mxu0 0
        %1003 = vmatpush1.bf16.xpose.msra.mxu0 0
        %1004 = vmatprep.subr.bf16.mxu0 0
        %1005 = vmatpush1.bf16.xpose.msra.mxu0 0
        %1006 = vmatprep.subr.bf16.mxu0 0
        %1007 = vmatpush1.bf16.xpose.msra.mxu0 0
        %1008 = vmatprep.subr.bf16.mxu0 0
        %1009 = vmatpush1.bf16.xpose.msra.mxu0 0
        %1010 = vmatprep.subr.bf16.mxu0 0
        %1011 = vmatpush1.bf16.xpose.msra.mxu0 0
        %1012 = vmatprep.subr.bf16.mxu0 0
        %1013 = vmatpush1.bf16.xpose.msra.mxu0 0
        %1014 = vmatprep.subr.bf16.mxu0 0
        %1015 = vmatpush1.bf16.xpose.msra.mxu0 0
        %1016 = vmatprep.mubr.bf16.mxu0 0
        %1017 = vmatmul.mubr.bf16.gmra.mrb[0].mxu0 %v976
        %v1018 = vpop.f32.mrb[0].mxu0
        %v1019 = vadd.f32 0.0, %v1018
        %v1020 = vpop.f32.mrb[0].mxu0
        %v1021 = vpop.f32.mrb[0].mxu0
        %v1022 = vadd.f32 0.0, %v1021
        %v1023 = vpop.f32.mrb[0].mxu0
        %1024 = vdwg.mxu0
        %v1025 = vsel %vm779, %v824, -inf
        %1026 = vmax.xlane.f32.xlu0 %v1025
        %v1027 = vpop.xlane.xlu0 %1026
        %v1028 = vsel %vm779, %v827, -inf
        %1029 = vmax.xlane.f32.xlu0 %v1028
        %v1030 = vpop.xlane.xlu0 %1029
        %v1031 = vsel %vm779, %v889, -inf
        %1032 = vmax.xlane.f32.xlu0 %v1031
        %v1033 = vpop.xlane.xlu0 %1032
        %v1034 = vsel %vm779, %v892, -inf
        %1035 = vmax.xlane.f32.xlu0 %v1034
        %v1036 = vpop.xlane.xlu0 %1035
        %v1037 = vsel %vm779, %v954, -inf
        %1038 = vmax.xlane.f32.xlu0 %v1037
        %v1039 = vpop.xlane.xlu0 %1038
        %v1040 = vsel %vm779, %v957, -inf
        %1041 = vmax.xlane.f32.xlu0 %v1040
        %v1042 = vpop.xlane.xlu0 %1041
        %v1043 = vsel %vm779, %v1019, -inf
        %1044 = vmax.xlane.f32.xlu0 %v1043
        %v1045 = vpop.xlane.xlu0 %1044
        %v1046 = vsel %vm779, %v1022, -inf
        %1047 = vmax.xlane.f32.xlu0 %v1046
        %v1048 = vpop.xlane.xlu0 %1047
        %v1049 = vsub.f32 %v824, %v1027
        %v1050 = vsub.f32 %v827, %v1030
        %v1051 = vsub.f32 %v889, %v1033
        %v1052 = vsub.f32 %v892, %v1036
        %v1053 = vsub.f32 %v954, %v1039
        %v1054 = vsub.f32 %v957, %v1042
        %v1055 = vsub.f32 %v1019, %v1045
        %v1056 = vsub.f32 %v1022, %v1048
        %v1057 = vmul.f32 %v1049, 1.442695
        %v1058 = vpow.pop %v1057
        %v1059 = vmul.f32 %v1050, 1.442695
        %v1060 = vpow.pop %v1059
        %v1061 = vmul.f32 %v1051, 1.442695
        %v1062 = vpow.pop %v1061
        %v1063 = vmul.f32 %v1052, 1.442695
        %v1064 = vpow.pop %v1063
        %v1065 = vmul.f32 %v1053, 1.442695
        %v1066 = vpow.pop %v1065
        %v1067 = vmul.f32 %v1054, 1.442695
        %v1068 = vpow.pop %v1067
        %v1069 = vmul.f32 %v1055, 1.442695
        %v1070 = vpow.pop %v1069
        %v1071 = vmul.f32 %v1056, 1.442695
        %v1072 = vpow.pop %v1071
        %v1073 = vsel %vm779, %v1058, 0.0
        %1074 = vadd.xlane.f32.xlu0 %v1073
        %v1075 = vpop.xlane.xlu0 %1074
        %v1076 = vsel %vm779, %v1060, 0.0
        %1077 = vadd.xlane.f32.xlu0 %v1076
        %v1078 = vpop.xlane.xlu0 %1077
        %v1079 = vsel %vm779, %v1062, 0.0
        %1080 = vadd.xlane.f32.xlu0 %v1079
        %v1081 = vpop.xlane.xlu0 %1080
        %v1082 = vsel %vm779, %v1064, 0.0
        %1083 = vadd.xlane.f32.xlu0 %v1082
        %v1084 = vpop.xlane.xlu0 %1083
        %v1085 = vsel %vm779, %v1066, 0.0
        %1086 = vadd.xlane.f32.xlu0 %v1085
        %v1087 = vpop.xlane.xlu0 %1086
        %v1088 = vsel %vm779, %v1068, 0.0
        %1089 = vadd.xlane.f32.xlu0 %v1088
        %v1090 = vpop.xlane.xlu0 %1089
        %v1091 = vsel %vm779, %v1070, 0.0
        %1092 = vadd.xlane.f32.xlu0 %v1091
        %v1093 = vpop.xlane.xlu0 %1092
        %v1094 = vsel %vm779, %v1072, 0.0
        %1095 = vadd.xlane.f32.xlu0 %v1094
        %v1096 = vpop.xlane.xlu0 %1095
        %v1097 = vrcp.pop %v1075
        %v1098 = vrcp.pop %v1078
        %v1099 = vrcp.pop %v1081
        %v1100 = vrcp.pop %v1084
        %v1101 = vrcp.pop %v1087
        %v1102 = vrcp.pop %v1090
        %v1103 = vrcp.pop %v1093
        %v1104 = vrcp.pop %v1096
        %v1105 = vmul.f32 %v1058, %v1097
        %v1106 = vmul.f32 %v1060, %v1098
        %v1107 = vmul.f32 %v1062, %v1099
        %v1108 = vmul.f32 %v1064, %v1100
        %v1109 = vmul.f32 %v1066, %v1101
        %v1110 = vmul.f32 %v1068, %v1102
        %v1111 = vmul.f32 %v1070, %v1103
        %v1112 = vmul.f32 %v1072, %v1104
        %v1113 = vpack.c.bf16 %v1106, %v1105
        %v1114 = vpack.c.bf16 %v1108, %v1107
        %v1115 = vpack.c.bf16 %v1110, %v1109
        %v1116 = vpack.c.bf16 %v1112, %v1111
        %v1121 = vunpack.c.l.b16 %v748
        %v1122 = vunpack.c.l.b16 %v749
        %v1123 = vunpack.c.l.b16 %v750
        %v1124 = vunpack.c.l.b16 %v751
        %v1125 = vpack.c.b16 %v1122, %v1121
        %v1126 = vpack.c.b16 %v1124, %v1123
        %v1130 = vsel %vm779, %v1113, 0
        %1132 = vmatprep.subr.bf16.mxu0 0
        %1133 = vmatpush1.bf16.msra.mxu0 %v1125
        %1134 = vmatprep.subr.bf16.mxu0 0
        %1135 = vmatpush1.bf16.msra.mxu0 %v1126
        %1136 = vmatprep.subr.bf16.mxu0 0
        %1137 = vmatpush1.bf16.msra.mxu0 0
        %1138 = vmatprep.subr.bf16.mxu0 0
        %1139 = vmatpush1.bf16.msra.mxu0 0
        %1140 = vmatprep.subr.bf16.mxu0 0
        %1141 = vmatpush1.bf16.msra.mxu0 0
        %1142 = vmatprep.subr.bf16.mxu0 0
        %1143 = vmatpush1.bf16.msra.mxu0 0
        %1144 = vmatprep.subr.bf16.mxu0 0
        %1145 = vmatpush1.bf16.msra.mxu0 0
        %1146 = vmatprep.subr.bf16.mxu0 0
        %1147 = vmatpush1.bf16.msra.mxu0 0
        %1148 = vmatprep.subr.bf16.mxu0 0
        %1149 = vmatpush1.bf16.msra.mxu0 0
        %1150 = vmatprep.subr.bf16.mxu0 0
        %1151 = vmatpush1.bf16.msra.mxu0 0
        %1152 = vmatprep.subr.bf16.mxu0 0
        %1153 = vmatpush1.bf16.msra.mxu0 0
        %1154 = vmatprep.subr.bf16.mxu0 0
        %1155 = vmatpush1.bf16.msra.mxu0 0
        %1156 = vmatprep.subr.bf16.mxu0 0
        %1157 = vmatpush1.bf16.msra.mxu0 0
        %1158 = vmatprep.subr.bf16.mxu0 0
        %1159 = vmatpush1.bf16.msra.mxu0 0
        %1160 = vmatprep.subr.bf16.mxu0 0
        %1161 = vmatpush1.bf16.msra.mxu0 0
        %1162 = vmatprep.subr.bf16.mxu0 0
        %1163 = vmatpush1.bf16.msra.mxu0 0
        %1164 = vmatprep.mubr.bf16.mxu0 0
        %1165 = vmatmul.mubr.bf16.gmra.mrb[0].mxu0 %v1130
        %v1166 = vpop.f32.mrb[0].mxu0
        %v1167 = vadd.f32 0.0, %v1166
        %v1168 = vpop.f32.mrb[0].mxu0
        %v1169 = vpop.f32.mrb[0].mxu0
        %v1170 = vadd.f32 0.0, %v1169
        %v1171 = vpop.f32.mrb[0].mxu0
        %1172 = vdwg.mxu0
        %v1177 = vunpack.c.l.b16 %v752
        %v1178 = vunpack.c.l.b16 %v753
        %v1179 = vunpack.c.l.b16 %v754
        %v1180 = vunpack.c.l.b16 %v755
        %v1181 = vpack.c.b16 %v1178, %v1177
        %v1182 = vpack.c.b16 %v1180, %v1179
        %v1186 = vsel %vm779, %v1114, 0
        %1188 = vmatprep.subr.bf16.mxu0 0
        %1189 = vmatpush1.bf16.msra.mxu0 %v1181
        %1190 = vmatprep.subr.bf16.mxu0 0
        %1191 = vmatpush1.bf16.msra.mxu0 %v1182
        %1192 = vmatprep.subr.bf16.mxu0 0
        %1193 = vmatpush1.bf16.msra.mxu0 0
        %1194 = vmatprep.subr.bf16.mxu0 0
        %1195 = vmatpush1.bf16.msra.mxu0 0
        %1196 = vmatprep.subr.bf16.mxu0 0
        %1197 = vmatpush1.bf16.msra.mxu0 0
        %1198 = vmatprep.subr.bf16.mxu0 0
        %1199 = vmatpush1.bf16.msra.mxu0 0
        %1200 = vmatprep.subr.bf16.mxu0 0
        %1201 = vmatpush1.bf16.msra.mxu0 0
        %1202 = vmatprep.subr.bf16.mxu0 0
        %1203 = vmatpush1.bf16.msra.mxu0 0
        %1204 = vmatprep.subr.bf16.mxu0 0
        %1205 = vmatpush1.bf16.msra.mxu0 0
        %1206 = vmatprep.subr.bf16.mxu0 0
        %1207 = vmatpush1.bf16.msra.mxu0 0
        %1208 = vmatprep.subr.bf16.mxu0 0
        %1209 = vmatpush1.bf16.msra.mxu0 0
        %1210 = vmatprep.subr.bf16.mxu0 0
        %1211 = vmatpush1.bf16.msra.mxu0 0
        %1212 = vmatprep.subr.bf16.mxu0 0
        %1213 = vmatpush1.bf16.msra.mxu0 0
        %1214 = vmatprep.subr.bf16.mxu0 0
        %1215 = vmatpush1.bf16.msra.mxu0 0
        %1216 = vmatprep.subr.bf16.mxu0 0
        %1217 = vmatpush1.bf16.msra.mxu0 0
        %1218 = vmatprep.subr.bf16.mxu0 0
        %1219 = vmatpush1.bf16.msra.mxu0 0
        %1220 = vmatprep.mubr.bf16.mxu0 0
        %1221 = vmatmul.mubr.bf16.gmra.mrb[0].mxu0 %v1186
        %v1222 = vpop.f32.mrb[0].mxu0
        %v1223 = vadd.f32 0.0, %v1222
        %v1224 = vpop.f32.mrb[0].mxu0
        %v1225 = vpop.f32.mrb[0].mxu0
        %v1226 = vadd.f32 0.0, %v1225
        %v1227 = vpop.f32.mrb[0].mxu0
        %1228 = vdwg.mxu0
        %v1233 = vunpack.c.l.b16 %v756
        %v1234 = vunpack.c.l.b16 %v757
        %v1235 = vunpack.c.l.b16 %v758
        %v1236 = vunpack.c.l.b16 %v759
        %v1237 = vpack.c.b16 %v1234, %v1233
        %v1238 = vpack.c.b16 %v1236, %v1235
        %v1242 = vsel %vm779, %v1115, 0
        %1244 = vmatprep.subr.bf16.mxu0 0
        %1245 = vmatpush1.bf16.msra.mxu0 %v1237
        %1246 = vmatprep.subr.bf16.mxu0 0
        %1247 = vmatpush1.bf16.msra.mxu0 %v1238
        %1248 = vmatprep.subr.bf16.mxu0 0
        %1249 = vmatpush1.bf16.msra.mxu0 0
        %1250 = vmatprep.subr.bf16.mxu0 0
        %1251 = vmatpush1.bf16.msra.mxu0 0
        %1252 = vmatprep.subr.bf16.mxu0 0
        %1253 = vmatpush1.bf16.msra.mxu0 0
        %1254 = vmatprep.subr.bf16.mxu0 0
        %1255 = vmatpush1.bf16.msra.mxu0 0
        %1256 = vmatprep.subr.bf16.mxu0 0
        %1257 = vmatpush1.bf16.msra.mxu0 0
        %1258 = vmatprep.subr.bf16.mxu0 0
        %1259 = vmatpush1.bf16.msra.mxu0 0
        %1260 = vmatprep.subr.bf16.mxu0 0
        %1261 = vmatpush1.bf16.msra.mxu0 0
        %1262 = vmatprep.subr.bf16.mxu0 0
        %1263 = vmatpush1.bf16.msra.mxu0 0
        %1264 = vmatprep.subr.bf16.mxu0 0
        %1265 = vmatpush1.bf16.msra.mxu0 0
        %1266 = vmatprep.subr.bf16.mxu0 0
        %1267 = vmatpush1.bf16.msra.mxu0 0
        %1268 = vmatprep.subr.bf16.mxu0 0
        %1269 = vmatpush1.bf16.msra.mxu0 0
        %1270 = vmatprep.subr.bf16.mxu0 0
        %1271 = vmatpush1.bf16.msra.mxu0 0
        %1272 = vmatprep.subr.bf16.mxu0 0
        %1273 = vmatpush1.bf16.msra.mxu0 0
        %1274 = vmatprep.subr.bf16.mxu0 0
        %1275 = vmatpush1.bf16.msra.mxu0 0
        %1276 = vmatprep.mubr.bf16.mxu0 0
        %1277 = vmatmul.mubr.bf16.gmra.mrb[0].mxu0 %v1242
        %v1278 = vpop.f32.mrb[0].mxu0
        %v1279 = vadd.f32 0.0, %v1278
        %v1280 = vpop.f32.mrb[0].mxu0
        %v1281 = vpop.f32.mrb[0].mxu0
        %v1282 = vadd.f32 0.0, %v1281
        %v1283 = vpop.f32.mrb[0].mxu0
        %1284 = vdwg.mxu0
        %v1289 = vunpack.c.l.b16 %v760
        %v1290 = vunpack.c.l.b16 %v761
        %v1291 = vunpack.c.l.b16 %v762
        %v1292 = vunpack.c.l.b16 %v763
        %v1293 = vpack.c.b16 %v1290, %v1289
        %v1294 = vpack.c.b16 %v1292, %v1291
        %v1298 = vsel %vm779, %v1116, 0
        %1300 = vmatprep.subr.bf16.mxu0 0
        %1301 = vmatpush1.bf16.msra.mxu0 %v1293
        %1302 = vmatprep.subr.bf16.mxu0 0
        %1303 = vmatpush1.bf16.msra.mxu0 %v1294
        %1304 = vmatprep.subr.bf16.mxu0 0
        %1305 = vmatpush1.bf16.msra.mxu0 0
        %1306 = vmatprep.subr.bf16.mxu0 0
        %1307 = vmatpush1.bf16.msra.mxu0 0
        %1308 = vmatprep.subr.bf16.mxu0 0
        %1309 = vmatpush1.bf16.msra.mxu0 0
        %1310 = vmatprep.subr.bf16.mxu0 0
        %1311 = vmatpush1.bf16.msra.mxu0 0
        %1312 = vmatprep.subr.bf16.mxu0 0
        %1313 = vmatpush1.bf16.msra.mxu0 0
        %1314 = vmatprep.subr.bf16.mxu0 0
        %1315 = vmatpush1.bf16.msra.mxu0 0
        %1316 = vmatprep.subr.bf16.mxu0 0
        %1317 = vmatpush1.bf16.msra.mxu0 0
        %1318 = vmatprep.subr.bf16.mxu0 0
        %1319 = vmatpush1.bf16.msra.mxu0 0
        %1320 = vmatprep.subr.bf16.mxu0 0
        %1321 = vmatpush1.bf16.msra.mxu0 0
        %1322 = vmatprep.subr.bf16.mxu0 0
        %1323 = vmatpush1.bf16.msra.mxu0 0
        %1324 = vmatprep.subr.bf16.mxu0 0
        %1325 = vmatpush1.bf16.msra.mxu0 0
        %1326 = vmatprep.subr.bf16.mxu0 0
        %1327 = vmatpush1.bf16.msra.mxu0 0
        %1328 = vmatprep.subr.bf16.mxu0 0
        %1329 = vmatpush1.bf16.msra.mxu0 0
        %1330 = vmatprep.subr.bf16.mxu0 0
        %1331 = vmatpush1.bf16.msra.mxu0 0
        %1332 = vmatprep.mubr.bf16.mxu0 0
        %1333 = vmatmul.mubr.bf16.gmra.mrb[0].mxu0 %v1298
        %v1334 = vpop.f32.mrb[0].mxu0
        %v1335 = vadd.f32 0.0, %v1334
        %v1336 = vpop.f32.mrb[0].mxu0
        %v1337 = vpop.f32.mrb[0].mxu0
        %v1338 = vadd.f32 0.0, %v1337
        %v1339 = vpop.f32.mrb[0].mxu0
        %1340 = vdwg.mxu0
        %v1341 = vpack.c.bf16 %v1170, %v1167
        %v1342 = vpack.c.bf16 %v1226, %v1223
        %v1343 = vpack.c.bf16 %v1282, %v1279
        %v1344 = vpack.c.bf16 %v1338, %v1335
        %v1345 = vld [vmem:[#allocation11] sm:$0xf]
        %v1346 = vld [vmem:[#allocation11 + $0x4] sm:$0xf]
        %v1347 = vld [vmem:[#allocation11 + $0x8] sm:$0xf]
        %v1348 = vld [vmem:[#allocation11 + $0xc] sm:$0xf]
        %v1349 = vld [vmem:[#allocation11 + $0x10] sm:$0xf]
        %v1350 = vld [vmem:[#allocation11 + $0x14] sm:$0xf]
        %v1351 = vld [vmem:[#allocation11 + $0x18] sm:$0xf]
        %v1352 = vld [vmem:[#allocation11 + $0x1c] sm:$0xf]
        %v1353 = vld [vmem:[#allocation11 + $0x20] sm:$0xf]
        %v1354 = vld [vmem:[#allocation11 + $0x24] sm:$0xf]
        %v1355 = vld [vmem:[#allocation11 + $0x28] sm:$0xf]
        %v1356 = vld [vmem:[#allocation11 + $0x2c] sm:$0xf]
        %v1357 = vld [vmem:[#allocation11 + $0x30] sm:$0xf]
        %v1358 = vld [vmem:[#allocation11 + $0x34] sm:$0xf]
        %v1359 = vld [vmem:[#allocation11 + $0x38] sm:$0xf]
        %v1360 = vld [vmem:[#allocation11 + $0x3c] sm:$0xf]
        %v1365 = vunpack.c.l.b16 %v1345
        %v1366 = vunpack.c.l.b16 %v1346
        %v1367 = vunpack.c.l.b16 %v1347
        %v1368 = vunpack.c.l.b16 %v1348
        %v1369 = vpack.c.b16 %v1366, %v1365
        %v1370 = vpack.c.b16 %v1368, %v1367
        %v1374 = vsel %vm779, %v1341, 0
        %1376 = vmatprep.subr.bf16.mxu0 0
        %1377 = vmatpush1.bf16.msra.mxu0 %v1369
        %1378 = vmatprep.subr.bf16.mxu0 0
        %1379 = vmatpush1.bf16.msra.mxu0 %v1370
        %1380 = vmatprep.subr.bf16.mxu0 0
        %1381 = vmatpush1.bf16.msra.mxu0 0
        %1382 = vmatprep.subr.bf16.mxu0 0
        %1383 = vmatpush1.bf16.msra.mxu0 0
        %1384 = vmatprep.subr.bf16.mxu0 0
        %1385 = vmatpush1.bf16.msra.mxu0 0
        %1386 = vmatprep.subr.bf16.mxu0 0
        %1387 = vmatpush1.bf16.msra.mxu0 0
        %1388 = vmatprep.subr.bf16.mxu0 0
        %1389 = vmatpush1.bf16.msra.mxu0 0
        %1390 = vmatprep.subr.bf16.mxu0 0
        %1391 = vmatpush1.bf16.msra.mxu0 0
        %1392 = vmatprep.subr.bf16.mxu0 0
        %1393 = vmatpush1.bf16.msra.mxu0 0
        %1394 = vmatprep.subr.bf16.mxu0 0
        %1395 = vmatpush1.bf16.msra.mxu0 0
        %1396 = vmatprep.subr.bf16.mxu0 0
        %1397 = vmatpush1.bf16.msra.mxu0 0
        %1398 = vmatprep.subr.bf16.mxu0 0
        %1399 = vmatpush1.bf16.msra.mxu0 0
        %1400 = vmatprep.subr.bf16.mxu0 0
        %1401 = vmatpush1.bf16.msra.mxu0 0
        %1402 = vmatprep.subr.bf16.mxu0 0
        %1403 = vmatpush1.bf16.msra.mxu0 0
        %1404 = vmatprep.subr.bf16.mxu0 0
        %1405 = vmatpush1.bf16.msra.mxu0 0
        %1406 = vmatprep.subr.bf16.mxu0 0
        %1407 = vmatpush1.bf16.msra.mxu0 0
        %1408 = vmatprep.mubr.bf16.mxu0 0
        %1409 = vmatmul.mubr.bf16.gmra.mrb[0].mxu0 %v1374
        %v1410 = vpop.f32.mrb[0].mxu0
        %v1411 = vadd.f32 0.0, %v1410
        %v1412 = vpop.f32.mrb[0].mxu0
        %v1413 = vpop.f32.mrb[0].mxu0
        %v1414 = vadd.f32 0.0, %v1413
        %v1415 = vpop.f32.mrb[0].mxu0
        %1416 = vdwg.mxu0
        %v1421 = vunpack.c.l.b16 %v1349
        %v1422 = vunpack.c.l.b16 %v1350
        %v1423 = vunpack.c.l.b16 %v1351
        %v1424 = vunpack.c.l.b16 %v1352
        %v1425 = vpack.c.b16 %v1422, %v1421
        %v1426 = vpack.c.b16 %v1424, %v1423
        %v1430 = vsel %vm779, %v1342, 0
        %1432 = vmatprep.subr.bf16.mxu0 0
        %1433 = vmatpush1.bf16.msra.mxu0 %v1425
        %1434 = vmatprep.subr.bf16.mxu0 0
        %1435 = vmatpush1.bf16.msra.mxu0 %v1426
        %1436 = vmatprep.subr.bf16.mxu0 0
        %1437 = vmatpush1.bf16.msra.mxu0 0
        %1438 = vmatprep.subr.bf16.mxu0 0
        %1439 = vmatpush1.bf16.msra.mxu0 0
        %1440 = vmatprep.subr.bf16.mxu0 0
        %1441 = vmatpush1.bf16.msra.mxu0 0
        %1442 = vmatprep.subr.bf16.mxu0 0
        %1443 = vmatpush1.bf16.msra.mxu0 0
        %1444 = vmatprep.subr.bf16.mxu0 0
        %1445 = vmatpush1.bf16.msra.mxu0 0
        %1446 = vmatprep.subr.bf16.mxu0 0
        %1447 = vmatpush1.bf16.msra.mxu0 0
        %1448 = vmatprep.subr.bf16.mxu0 0
        %1449 = vmatpush1.bf16.msra.mxu0 0
        %1450 = vmatprep.subr.bf16.mxu0 0
        %1451 = vmatpush1.bf16.msra.mxu0 0
        %1452 = vmatprep.subr.bf16.mxu0 0
        %1453 = vmatpush1.bf16.msra.mxu0 0
        %1454 = vmatprep.subr.bf16.mxu0 0
        %1455 = vmatpush1.bf16.msra.mxu0 0
        %1456 = vmatprep.subr.bf16.mxu0 0
        %1457 = vmatpush1.bf16.msra.mxu0 0
        %1458 = vmatprep.subr.bf16.mxu0 0
        %1459 = vmatpush1.bf16.msra.mxu0 0
        %1460 = vmatprep.subr.bf16.mxu0 0
        %1461 = vmatpush1.bf16.msra.mxu0 0
        %1462 = vmatprep.subr.bf16.mxu0 0
        %1463 = vmatpush1.bf16.msra.mxu0 0
        %1464 = vmatprep.mubr.bf16.mxu0 0
        %1465 = vmatmul.mubr.bf16.gmra.mrb[0].mxu0 %v1430
        %v1466 = vpop.f32.mrb[0].mxu0
        %v1467 = vadd.f32 0.0, %v1466
        %v1468 = vpop.f32.mrb[0].mxu0
        %v1469 = vpop.f32.mrb[0].mxu0
        %v1470 = vadd.f32 0.0, %v1469
        %v1471 = vpop.f32.mrb[0].mxu0
        %1472 = vdwg.mxu0
        %v1477 = vunpack.c.l.b16 %v1353
        %v1478 = vunpack.c.l.b16 %v1354
        %v1479 = vunpack.c.l.b16 %v1355
        %v1480 = vunpack.c.l.b16 %v1356
        %v1481 = vpack.c.b16 %v1478, %v1477
        %v1482 = vpack.c.b16 %v1480, %v1479
        %v1486 = vsel %vm779, %v1343, 0
        %1488 = vmatprep.subr.bf16.mxu0 0
        %1489 = vmatpush1.bf16.msra.mxu0 %v1481
        %1490 = vmatprep.subr.bf16.mxu0 0
        %1491 = vmatpush1.bf16.msra.mxu0 %v1482
        %1492 = vmatprep.subr.bf16.mxu0 0
        %1493 = vmatpush1.bf16.msra.mxu0 0
        %1494 = vmatprep.subr.bf16.mxu0 0
        %1495 = vmatpush1.bf16.msra.mxu0 0
        %1496 = vmatprep.subr.bf16.mxu0 0
        %1497 = vmatpush1.bf16.msra.mxu0 0
        %1498 = vmatprep.subr.bf16.mxu0 0
        %1499 = vmatpush1.bf16.msra.mxu0 0
        %1500 = vmatprep.subr.bf16.mxu0 0
        %1501 = vmatpush1.bf16.msra.mxu0 0
        %1502 = vmatprep.subr.bf16.mxu0 0
        %1503 = vmatpush1.bf16.msra.mxu0 0
        %1504 = vmatprep.subr.bf16.mxu0 0
        %1505 = vmatpush1.bf16.msra.mxu0 0
        %1506 = vmatprep.subr.bf16.mxu0 0
        %1507 = vmatpush1.bf16.msra.mxu0 0
        %1508 = vmatprep.subr.bf16.mxu0 0
        %1509 = vmatpush1.bf16.msra.mxu0 0
        %1510 = vmatprep.subr.bf16.mxu0 0
        %1511 = vmatpush1.bf16.msra.mxu0 0
        %1512 = vmatprep.subr.bf16.mxu0 0
        %1513 = vmatpush1.bf16.msra.mxu0 0
        %1514 = vmatprep.subr.bf16.mxu0 0
        %1515 = vmatpush1.bf16.msra.mxu0 0
        %1516 = vmatprep.subr.bf16.mxu0 0
        %1517 = vmatpush1.bf16.msra.mxu0 0
        %1518 = vmatprep.subr.bf16.mxu0 0
        %1519 = vmatpush1.bf16.msra.mxu0 0
        %1520 = vmatprep.mubr.bf16.mxu0 0
        %1521 = vmatmul.mubr.bf16.gmra.mrb[0].mxu0 %v1486
        %v1522 = vpop.f32.mrb[0].mxu0
        %v1523 = vadd.f32 0.0, %v1522
        %v1524 = vpop.f32.mrb[0].mxu0
        %v1525 = vpop.f32.mrb[0].mxu0
        %v1526 = vadd.f32 0.0, %v1525
        %v1527 = vpop.f32.mrb[0].mxu0
        %1528 = vdwg.mxu0
        %v1533 = vunpack.c.l.b16 %v1357
        %v1534 = vunpack.c.l.b16 %v1358
        %v1535 = vunpack.c.l.b16 %v1359
        %v1536 = vunpack.c.l.b16 %v1360
        %v1537 = vpack.c.b16 %v1534, %v1533
        %v1538 = vpack.c.b16 %v1536, %v1535
        %v1542 = vsel %vm779, %v1344, 0
        %1544 = vmatprep.subr.bf16.mxu0 0
        %1545 = vmatpush1.bf16.msra.mxu0 %v1537
        %1546 = vmatprep.subr.bf16.mxu0 0
        %1547 = vmatpush1.bf16.msra.mxu0 %v1538
        %1548 = vmatprep.subr.bf16.mxu0 0
        %1549 = vmatpush1.bf16.msra.mxu0 0
        %1550 = vmatprep.subr.bf16.mxu0 0
        %1551 = vmatpush1.bf16.msra.mxu0 0
        %1552 = vmatprep.subr.bf16.mxu0 0
        %1553 = vmatpush1.bf16.msra.mxu0 0
        %1554 = vmatprep.subr.bf16.mxu0 0
        %1555 = vmatpush1.bf16.msra.mxu0 0
        %1556 = vmatprep.subr.bf16.mxu0 0
        %1557 = vmatpush1.bf16.msra.mxu0 0
        %1558 = vmatprep.subr.bf16.mxu0 0
        %1559 = vmatpush1.bf16.msra.mxu0 0
        %1560 = vmatprep.subr.bf16.mxu0 0
        %1561 = vmatpush1.bf16.msra.mxu0 0
        %1562 = vmatprep.subr.bf16.mxu0 0
        %1563 = vmatpush1.bf16.msra.mxu0 0
        %1564 = vmatprep.subr.bf16.mxu0 0
        %1565 = vmatpush1.bf16.msra.mxu0 0
        %1566 = vmatprep.subr.bf16.mxu0 0
        %1567 = vmatpush1.bf16.msra.mxu0 0
        %1568 = vmatprep.subr.bf16.mxu0 0
        %1569 = vmatpush1.bf16.msra.mxu0 0
        %1570 = vmatprep.subr.bf16.mxu0 0
        %1571 = vmatpush1.bf16.msra.mxu0 0
        %1572 = vmatprep.subr.bf16.mxu0 0
        %1573 = vmatpush1.bf16.msra.mxu0 0
        %1574 = vmatprep.subr.bf16.mxu0 0
        %1575 = vmatpush1.bf16.msra.mxu0 0
        %1576 = vmatprep.mubr.bf16.mxu0 0
        %1577 = vmatmul.mubr.bf16.gmra.mrb[0].mxu0 %v1542
        %v1578 = vpop.f32.mrb[0].mxu0
        %v1579 = vadd.f32 0.0, %v1578
        %v1580 = vpop.f32.mrb[0].mxu0
        %v1581 = vpop.f32.mrb[0].mxu0
        %v1582 = vadd.f32 0.0, %v1581
        %v1583 = vpop.f32.mrb[0].mxu0
        %1584 = vdwg.mxu0
        %v1585 = vadd.f32 %v1411, %v1467
        %v1586 = vadd.f32 %v1585, %v1523
        %v1587 = vadd.f32 %v1586, %v1579
        %v1588 = vadd.f32 %v1414, %v1470
        %v1589 = vadd.f32 %v1588, %v1526
        %v1590 = vadd.f32 %v1589, %v1582
        %p1591 = scmp.eq.s32.totalorder %s45, 0
        // Predicated region
        $region105: #{tpu_custom_call.1} parent=75 // pred_check
          %p1592 = pneg %p1591
        $region106: #{tpu_custom_call.1} parent=75 // pred_check_branch
          %1594 = sbr.rel (%p1592) target = $region108
        $region107: #{tpu_custom_call.1} parent=75 // pred_region
          %1595 = vst [vmem:[#allocation2] sm:$0xff] %v1587
          %1596 = vst [vmem:[#allocation2 + $0x8] sm:$0xff] %v1590
        $region108: #{tpu_custom_call.1} parent=75 // pred_fallthru
          _
        %p1597 = scmp.gt.s32.totalorder %s45, 0
        // Predicated region
        $region109: #{tpu_custom_call.1} parent=75 // pred_check
          %p1598 = pneg %p1597
        $region110: #{tpu_custom_call.1} parent=75 // pred_check_branch
          %1600 = sbr.rel (%p1598) target = $region112
        $region111: #{tpu_custom_call.1} parent=75 // pred_region
          %v1601 = vld [vmem:[#allocation2] sm:$0xff]
          %v1602 = vld [vmem:[#allocation2 + $0x8] sm:$0xff]
          %v1603 = vadd.f32 %v1601, %v1587
          %v1604 = vadd.f32 %v1602, %v1590
          %1605 = vst [vmem:[#allocation2] sm:$0xff] %v1603
          %1606 = vst [vmem:[#allocation2 + $0x8] sm:$0xff] %v1604
        $region112: #{tpu_custom_call.1} parent=75 // pred_fallthru
          _
        // Predicated region
        $region113: #{tpu_custom_call.1} parent=75 // pred_check
          %p1607 = pneg %p1591
        $region114: #{tpu_custom_call.1} parent=75 // pred_check_branch
          %1609 = sbr.rel (%p1607) target = $region116
        $region115: #{tpu_custom_call.1} parent=75 // pred_region
          %v1610 = vld [vmem:[%s618] sm:$0xff]
          %v1611 = vld [vmem:[%s618 + $0x8] sm:$0xff]
          %v1612 = vld [vmem:[#allocation2] sm:$0xff]
          %v1613 = vld [vmem:[#allocation2 + $0x8] sm:$0xff]
          %v1614 = vld [vmem:[%s5] sm:$0x1]
          %v1616 = vlaneseq
          %v1617 = vshrl.u32 %v1616, 7
          %v1618 = vsub.s32 0, %v1617
          %v1619 = vrot.slane %v1614, %v1618
          %v1621 = vadd.f32 %v1612, %v1619
          %v1622 = vadd.f32 %v1613, %v1619
          %v1623 = vadd.f32 %v1621, %v1610
          %v1624 = vadd.f32 %v1622, %v1611
          %v1625 = vld [vmem:[%s6] sm:$0x1]
          %v1626 = vld [vmem:[%s7] sm:$0x1]
          %1627 = vadd.xlane.f32.xlu0 %v1623
          %v1628 = vpop.xlane.xlu0 %1627
          %1629 = vadd.xlane.f32.xlu0 %v1624
          %v1630 = vpop.xlane.xlu0 %1629
          %v1631 = vrcp.pop 128.0
          %v1632 = vmul.f32 %v1628, %v1631
          %v1633 = vmul.f32 %v1630, %v1631
          %v1634 = vsub.f32 %v1623, %v1632
          %v1635 = vsub.f32 %v1624, %v1633
          %v1636 = vmul.f32 %v1634, %v1634
          %v1637 = vmul.f32 %v1635, %v1635
          %1638 = vadd.xlane.f32.xlu0 %v1636
          %v1639 = vpop.xlane.xlu0 %1638
          %1640 = vadd.xlane.f32.xlu0 %v1637
          %v1641 = vpop.xlane.xlu0 %1640
          %v1642 = vmul.f32 %v1639, %v1631
          %v1643 = vmul.f32 %v1641, %v1631
          %v1644 = vadd.f32 %v1642, 1e-12
          %v1645 = vadd.f32 %v1643, 1e-12
          %v1646 = vrsqrt.pop %v1644
          %v1647 = vrsqrt.pop %v1645
          %v1648 = vmul.f32 %v1634, %v1646
          %v1649 = vmul.f32 %v1635, %v1647
          %v1651 = vlaneseq
          %v1652 = vshrl.u32 %v1651, 7
          %v1653 = vsub.s32 0, %v1652
          %v1654 = vrot.slane %v1625, %v1653
          %v1656 = vmul.f32 %v1648, %v1654
          %v1657 = vmul.f32 %v1649, %v1654
          %v1659 = vlaneseq
          %v1660 = vshrl.u32 %v1659, 7
          %v1661 = vsub.s32 0, %v1660
          %v1662 = vrot.slane %v1626, %v1661
          %v1664 = vadd.f32 %v1656, %v1662
          %v1665 = vadd.f32 %v1657, %v1662
          %v1666 = vpack.c.bf16 %v1665, %v1664
          %v1667 = vld [vmem:[%s11] sm:$0x1]
          %v1669 = vlaneseq
          %v1670 = vshrl.u32 %v1669, 7
          %v1671 = vsub.s32 0, %v1670
          %v1672 = vrot.slane %v1667, %v1671
          %v1674 = vadd.f32 %v1664, %v1672
          %v1675 = vadd.f32 %v1665, %v1672
          %v1676 = vld [vmem:[#allocation12] sm:$0xff]
          %v1677 = vld [vmem:[#allocation12 + $0x8] sm:$0xff]
          %v1678 = vld [vmem:[#allocation12 + $0x10] sm:$0xff]
          %v1679 = vld [vmem:[#allocation12 + $0x18] sm:$0xff]
          %v1680 = vld [vmem:[#allocation12 + $0x20] sm:$0xff]
          %v1681 = vld [vmem:[#allocation12 + $0x28] sm:$0xff]
          %v1682 = vld [vmem:[#allocation12 + $0x30] sm:$0xff]
          %v1683 = vld [vmem:[#allocation12 + $0x38] sm:$0xff]
          %v1684 = vld [vmem:[#allocation12 + $0x40] sm:$0xff]
          %v1685 = vld [vmem:[#allocation12 + $0x48] sm:$0xff]
          %v1686 = vld [vmem:[#allocation12 + $0x50] sm:$0xff]
          %v1687 = vld [vmem:[#allocation12 + $0x58] sm:$0xff]
          %v1688 = vld [vmem:[#allocation12 + $0x60] sm:$0xff]
          %v1689 = vld [vmem:[#allocation12 + $0x68] sm:$0xff]
          %v1690 = vld [vmem:[#allocation12 + $0x70] sm:$0xff]
          %v1691 = vld [vmem:[#allocation12 + $0x78] sm:$0xff]
          %v1692 = vld [vmem:[#allocation12 + $0x80] sm:$0xff]
          %v1693 = vld [vmem:[#allocation12 + $0x88] sm:$0xff]
          %v1694 = vld [vmem:[#allocation12 + $0x90] sm:$0xff]
          %v1695 = vld [vmem:[#allocation12 + $0x98] sm:$0xff]
          %v1696 = vld [vmem:[#allocation12 + $0xa0] sm:$0xff]
          %v1697 = vld [vmem:[#allocation12 + $0xa8] sm:$0xff]
          %v1698 = vld [vmem:[#allocation12 + $0xb0] sm:$0xff]
          %v1699 = vld [vmem:[#allocation12 + $0xb8] sm:$0xff]
          %v1700 = vld [vmem:[#allocation12 + $0xc0] sm:$0xff]
          %v1701 = vld [vmem:[#allocation12 + $0xc8] sm:$0xff]
          %v1702 = vld [vmem:[#allocation12 + $0xd0] sm:$0xff]
          %v1703 = vld [vmem:[#allocation12 + $0xd8] sm:$0xff]
          %v1704 = vld [vmem:[#allocation12 + $0xe0] sm:$0xff]
          %v1705 = vld [vmem:[#allocation12 + $0xe8] sm:$0xff]
          %v1706 = vld [vmem:[#allocation12 + $0xf0] sm:$0xff]
          %v1707 = vld [vmem:[#allocation12 + $0xf8] sm:$0xff]
          %v1708 = vld [vmem:[%s9] sm:$0xf]
          %v1710 = vlaneseq
          %v1711 = vshrl.u32 %v1710, 7
          %v1712 = vsub.s32 0, %v1711
          %v1713 = vrot.slane %v1708, %v1712
          %v1714 = vlaneseq
          %v1715 = vshrl.u32 %v1714, 7
          %v1716 = vsub.s32 1, %v1715
          %v1717 = vrot.slane %v1708, %v1716
          %v1718 = vlaneseq
          %v1719 = vshrl.u32 %v1718, 7
          %v1720 = vsub.s32 2, %v1719
          %v1721 = vrot.slane %v1708, %v1720
          %v1722 = vlaneseq
          %v1723 = vshrl.u32 %v1722, 7
          %v1724 = vsub.s32 3, %v1723
          %v1725 = vrot.slane %v1708, %v1724
          %v1762 = vunpack.c.l.b16 %v1676
          %v1763 = vunpack.c.h.b16 %v1676
          %v1764 = vunpack.c.l.b16 %v1677
          %v1765 = vunpack.c.h.b16 %v1677
          %v1766 = vunpack.c.l.b16 %v1678
          %v1767 = vunpack.c.h.b16 %v1678
          %v1768 = vunpack.c.l.b16 %v1679
          %v1769 = vunpack.c.h.b16 %v1679
          %v1770 = vunpack.c.l.b16 %v1680
          %v1771 = vunpack.c.h.b16 %v1680
          %v1772 = vunpack.c.l.b16 %v1681
          %v1773 = vunpack.c.h.b16 %v1681
          %v1774 = vunpack.c.l.b16 %v1682
          %v1775 = vunpack.c.h.b16 %v1682
          %v1776 = vunpack.c.l.b16 %v1683
          %v1777 = vunpack.c.h.b16 %v1683
          %v1778 = vunpack.c.l.b16 %v1684
          %v1779 = vunpack.c.h.b16 %v1684
          %v1780 = vunpack.c.l.b16 %v1685
          %v1781 = vunpack.c.h.b16 %v1685
          %v1782 = vunpack.c.l.b16 %v1686
          %v1783 = vunpack.c.h.b16 %v1686
          %v1784 = vunpack.c.l.b16 %v1687
          %v1785 = vunpack.c.h.b16 %v1687
          %v1786 = vunpack.c.l.b16 %v1688
          %v1787 = vunpack.c.h.b16 %v1688
          %v1788 = vunpack.c.l.b16 %v1689
          %v1789 = vunpack.c.h.b16 %v1689
          %v1790 = vunpack.c.l.b16 %v1690
          %v1791 = vunpack.c.h.b16 %v1690
          %v1792 = vunpack.c.l.b16 %v1691
          %v1793 = vunpack.c.h.b16 %v1691
          %v1794 = vunpack.c.l.b16 %v1692
          %v1795 = vunpack.c.h.b16 %v1692
          %v1796 = vunpack.c.l.b16 %v1693
          %v1797 = vunpack.c.h.b16 %v1693
          %v1798 = vunpack.c.l.b16 %v1694
          %v1799 = vunpack.c.h.b16 %v1694
          %v1800 = vunpack.c.l.b16 %v1695
          %v1801 = vunpack.c.h.b16 %v1695
          %v1802 = vunpack.c.l.b16 %v1696
          %v1803 = vunpack.c.h.b16 %v1696
          %v1804 = vunpack.c.l.b16 %v1697
          %v1805 = vunpack.c.h.b16 %v1697
          %v1806 = vunpack.c.l.b16 %v1698
          %v1807 = vunpack.c.h.b16 %v1698
          %v1808 = vunpack.c.l.b16 %v1699
          %v1809 = vunpack.c.h.b16 %v1699
          %v1810 = vunpack.c.l.b16 %v1700
          %v1811 = vunpack.c.h.b16 %v1700
          %v1812 = vunpack.c.l.b16 %v1701
          %v1813 = vunpack.c.h.b16 %v1701
          %v1814 = vunpack.c.l.b16 %v1702
          %v1815 = vunpack.c.h.b16 %v1702
          %v1816 = vunpack.c.l.b16 %v1703
          %v1817 = vunpack.c.h.b16 %v1703
          %v1818 = vunpack.c.l.b16 %v1704
          %v1819 = vunpack.c.h.b16 %v1704
          %v1820 = vunpack.c.l.b16 %v1705
          %v1821 = vunpack.c.h.b16 %v1705
          %v1822 = vunpack.c.l.b16 %v1706
          %v1823 = vunpack.c.h.b16 %v1706
          %v1824 = vunpack.c.l.b16 %v1707
          %v1825 = vunpack.c.h.b16 %v1707
          %v1826 = vpack.c.b16 %v1766, %v1762
          %v1827 = vpack.c.b16 %v1767, %v1763
          %v1828 = vpack.c.b16 %v1768, %v1764
          %v1829 = vpack.c.b16 %v1769, %v1765
          %v1830 = vpack.c.b16 %v1774, %v1770
          %v1831 = vpack.c.b16 %v1775, %v1771
          %v1832 = vpack.c.b16 %v1776, %v1772
          %v1833 = vpack.c.b16 %v1777, %v1773
          %v1834 = vpack.c.b16 %v1782, %v1778
          %v1835 = vpack.c.b16 %v1783, %v1779
          %v1836 = vpack.c.b16 %v1784, %v1780
          %v1837 = vpack.c.b16 %v1785, %v1781
          %v1838 = vpack.c.b16 %v1790, %v1786
          %v1839 = vpack.c.b16 %v1791, %v1787
          %v1840 = vpack.c.b16 %v1792, %v1788
          %v1841 = vpack.c.b16 %v1793, %v1789
          %v1842 = vpack.c.b16 %v1798, %v1794
          %v1843 = vpack.c.b16 %v1799, %v1795
          %v1844 = vpack.c.b16 %v1800, %v1796
          %v1845 = vpack.c.b16 %v1801, %v1797
          %v1846 = vpack.c.b16 %v1806, %v1802
          %v1847 = vpack.c.b16 %v1807, %v1803
          %v1848 = vpack.c.b16 %v1808, %v1804
          %v1849 = vpack.c.b16 %v1809, %v1805
          %v1850 = vpack.c.b16 %v1814, %v1810
          %v1851 = vpack.c.b16 %v1815, %v1811
          %v1852 = vpack.c.b16 %v1816, %v1812
          %v1853 = vpack.c.b16 %v1817, %v1813
          %v1854 = vpack.c.b16 %v1822, %v1818
          %v1855 = vpack.c.b16 %v1823, %v1819
          %v1856 = vpack.c.b16 %v1824, %v1820
          %v1857 = vpack.c.b16 %v1825, %v1821
          %1890 = vmatprep.subr.bf16.mxu0 %v1827
          %1891 = vmatpush1.bf16.msra.mxu0 %v1826
          %1892 = vmatprep.subr.bf16.mxu0 %v1831
          %1893 = vmatpush1.bf16.msra.mxu0 %v1830
          %1894 = vmatprep.subr.bf16.mxu0 %v1835
          %1895 = vmatpush1.bf16.msra.mxu0 %v1834
          %1896 = vmatprep.subr.bf16.mxu0 %v1839
          %1897 = vmatpush1.bf16.msra.mxu0 %v1838
          %1898 = vmatprep.subr.bf16.mxu0 %v1843
          %1899 = vmatpush1.bf16.msra.mxu0 %v1842
          %1900 = vmatprep.subr.bf16.mxu0 %v1847
          %1901 = vmatpush1.bf16.msra.mxu0 %v1846
          %1902 = vmatprep.subr.bf16.mxu0 %v1851
          %1903 = vmatpush1.bf16.msra.mxu0 %v1850
          %1904 = vmatprep.subr.bf16.mxu0 %v1855
          %1905 = vmatpush1.bf16.msra.mxu0 %v1854
          %1906 = vmatprep.subr.bf16.mxu0 0
          %1907 = vmatpush1.bf16.msra.mxu0 0
          %1908 = vmatprep.subr.bf16.mxu0 0
          %1909 = vmatpush1.bf16.msra.mxu0 0
          %1910 = vmatprep.subr.bf16.mxu0 0
          %1911 = vmatpush1.bf16.msra.mxu0 0
          %1912 = vmatprep.subr.bf16.mxu0 0
          %1913 = vmatpush1.bf16.msra.mxu0 0
          %1914 = vmatprep.subr.bf16.mxu0 0
          %1915 = vmatpush1.bf16.msra.mxu0 0
          %1916 = vmatprep.subr.bf16.mxu0 0
          %1917 = vmatpush1.bf16.msra.mxu0 0
          %1918 = vmatprep.subr.bf16.mxu0 0
          %1919 = vmatpush1.bf16.msra.mxu0 0
          %1920 = vmatprep.subr.bf16.mxu0 0
          %1921 = vmatpush1.bf16.msra.mxu0 0
          %1922 = vmatprep.mubr.bf16.mxu0 0
          %1923 = vmatmul.mubr.bf16.gmra.mrb[0].mxu0 %v1666
          %v1924 = vpop.f32.mrb[0].mxu0
          %v1925 = vadd.f32 %v1713, %v1924
          %v1926 = vpop.f32.mrb[0].mxu0
          %v1927 = vadd.f32 %v1717, %v1926
          %v1928 = vpop.f32.mrb[0].mxu0
          %v1929 = vadd.f32 %v1713, %v1928
          %v1930 = vpop.f32.mrb[0].mxu0
          %v1931 = vadd.f32 %v1717, %v1930
          %1932 = vdwg.mxu0
          %1933 = vmatprep.subr.bf16.mxu0 %v1829
          %1934 = vmatpush1.bf16.msra.mxu0 %v1828
          %1935 = vmatprep.subr.bf16.mxu0 %v1833
          %1936 = vmatpush1.bf16.msra.mxu0 %v1832
          %1937 = vmatprep.subr.bf16.mxu0 %v1837
          %1938 = vmatpush1.bf16.msra.mxu0 %v1836
          %1939 = vmatprep.subr.bf16.mxu0 %v1841
          %1940 = vmatpush1.bf16.msra.mxu0 %v1840
          %1941 = vmatprep.subr.bf16.mxu0 %v1845
          %1942 = vmatpush1.bf16.msra.mxu0 %v1844
          %1943 = vmatprep.subr.bf16.mxu0 %v1849
          %1944 = vmatpush1.bf16.msra.mxu0 %v1848
          %1945 = vmatprep.subr.bf16.mxu0 %v1853
          %1946 = vmatpush1.bf16.msra.mxu0 %v1852
          %1947 = vmatprep.subr.bf16.mxu0 %v1857
          %1948 = vmatpush1.bf16.msra.mxu0 %v1856
          %1949 = vmatprep.subr.bf16.mxu0 0
          %1950 = vmatpush1.bf16.msra.mxu0 0
          %1951 = vmatprep.subr.bf16.mxu0 0
          %1952 = vmatpush1.bf16.msra.mxu0 0
          %1953 = vmatprep.subr.bf16.mxu0 0
          %1954 = vmatpush1.bf16.msra.mxu0 0
          %1955 = vmatprep.subr.bf16.mxu0 0
          %1956 = vmatpush1.bf16.msra.mxu0 0
          %1957 = vmatprep.subr.bf16.mxu0 0
          %1958 = vmatpush1.bf16.msra.mxu0 0
          %1959 = vmatprep.subr.bf16.mxu0 0
          %1960 = vmatpush1.bf16.msra.mxu0 0
          %1961 = vmatprep.subr.bf16.mxu0 0
          %1962 = vmatpush1.bf16.msra.mxu0 0
          %1963 = vmatprep.subr.bf16.mxu0 0
          %1964 = vmatpush1.bf16.msra.mxu0 0
          %1965 = vmatprep.mubr.bf16.mxu0 0
          %1966 = vmatmul.mubr.bf16.gmra.mrb[0].mxu0 %v1666
          %v1967 = vpop.f32.mrb[0].mxu0
          %v1968 = vadd.f32 %v1721, %v1967
          %v1969 = vpop.f32.mrb[0].mxu0
          %v1970 = vadd.f32 %v1725, %v1969
          %v1971 = vpop.f32.mrb[0].mxu0
          %v1972 = vadd.f32 %v1721, %v1971
          %v1973 = vpop.f32.mrb[0].mxu0
          %v1974 = vadd.f32 %v1725, %v1973
          %1975 = vdwg.mxu0
          %v1976 = vmul.f32 %v1925, %v1925
          %v1977 = vmul.f32 %v1927, %v1927
          %v1978 = vmul.f32 %v1968, %v1968
          %v1979 = vmul.f32 %v1970, %v1970
          %v1980 = vmul.f32 %v1929, %v1929
          %v1981 = vmul.f32 %v1931, %v1931
          %v1982 = vmul.f32 %v1972, %v1972
          %v1983 = vmul.f32 %v1974, %v1974
          %v1984 = vmul.f32 %v1925, %v1976
          %v1985 = vmul.f32 %v1927, %v1977
          %v1986 = vmul.f32 %v1968, %v1978
          %v1987 = vmul.f32 %v1970, %v1979
          %v1988 = vmul.f32 %v1929, %v1980
          %v1989 = vmul.f32 %v1931, %v1981
          %v1990 = vmul.f32 %v1972, %v1982
          %v1991 = vmul.f32 %v1974, %v1983
          %v1992 = vmul.f32 %v1984, 0.044715
          %v1993 = vmul.f32 %v1985, 0.044715
          %v1994 = vmul.f32 %v1986, 0.044715
          %v1995 = vmul.f32 %v1987, 0.044715
          %v1996 = vmul.f32 %v1988, 0.044715
          %v1997 = vmul.f32 %v1989, 0.044715
          %v1998 = vmul.f32 %v1990, 0.044715
          %v1999 = vmul.f32 %v1991, 0.044715
          %v2000 = vadd.f32 %v1925, %v1992
          %v2001 = vadd.f32 %v1927, %v1993
          %v2002 = vadd.f32 %v1968, %v1994
          %v2003 = vadd.f32 %v1970, %v1995
          %v2004 = vadd.f32 %v1929, %v1996
          %v2005 = vadd.f32 %v1931, %v1997
          %v2006 = vadd.f32 %v1972, %v1998
          %v2007 = vadd.f32 %v1974, %v1999
          %v2008 = vmul.f32 %v2000, 0.7978846
          %v2009 = vmul.f32 %v2001, 0.7978846
          %v2010 = vmul.f32 %v2002, 0.7978846
          %v2011 = vmul.f32 %v2003, 0.7978846
          %v2012 = vmul.f32 %v2004, 0.7978846
          %v2013 = vmul.f32 %v2005, 0.7978846
          %v2014 = vmul.f32 %v2006, 0.7978846
          %v2015 = vmul.f32 %v2007, 0.7978846
          %v2016 = vtanh.pop %v2008
          %v2017 = vtanh.pop %v2009
          %v2018 = vtanh.pop %v2010
          %v2019 = vtanh.pop %v2011
          %v2020 = vtanh.pop %v2012
          %v2021 = vtanh.pop %v2013
          %v2022 = vtanh.pop %v2014
          %v2023 = vtanh.pop %v2015
          %v2024 = vadd.f32 %v2016, 1.0
          %v2025 = vadd.f32 %v2017, 1.0
          %v2026 = vadd.f32 %v2018, 1.0
          %v2027 = vadd.f32 %v2019, 1.0
          %v2028 = vadd.f32 %v2020, 1.0
          %v2029 = vadd.f32 %v2021, 1.0
          %v2030 = vadd.f32 %v2022, 1.0
          %v2031 = vadd.f32 %v2023, 1.0
          %v2032 = vmul.f32 %v2024, 0.5
          %v2033 = vmul.f32 %v2025, 0.5
          %v2034 = vmul.f32 %v2026, 0.5
          %v2035 = vmul.f32 %v2027, 0.5
          %v2036 = vmul.f32 %v2028, 0.5
          %v2037 = vmul.f32 %v2029, 0.5
          %v2038 = vmul.f32 %v2030, 0.5
          %v2039 = vmul.f32 %v2031, 0.5
          %v2040 = vmul.f32 %v1925, %v2032
          %v2041 = vmul.f32 %v1927, %v2033
          %v2042 = vmul.f32 %v1968, %v2034
          %v2043 = vmul.f32 %v1970, %v2035
          %v2044 = vmul.f32 %v1929, %v2036
          %v2045 = vmul.f32 %v1931, %v2037
          %v2046 = vmul.f32 %v1972, %v2038
          %v2047 = vmul.f32 %v1974, %v2039
          %v2048 = vpack.c.bf16 %v2044, %v2040
          %v2049 = vpack.c.bf16 %v2045, %v2041
          %v2050 = vpack.c.bf16 %v2046, %v2042
          %v2051 = vpack.c.bf16 %v2047, %v2043
          %v2052 = vld [vmem:[#allocation14] sm:$0xf]
          %v2053 = vld [vmem:[#allocation14 + $0x4] sm:$0xf]
          %v2054 = vld [vmem:[#allocation14 + $0x8] sm:$0xf]
          %v2055 = vld [vmem:[#allocation14 + $0xc] sm:$0xf]
          %v2056 = vld [vmem:[#allocation14 + $0x10] sm:$0xf]
          %v2057 = vld [vmem:[#allocation14 + $0x14] sm:$0xf]
          %v2058 = vld [vmem:[#allocation14 + $0x18] sm:$0xf]
          %v2059 = vld [vmem:[#allocation14 + $0x1c] sm:$0xf]
          %v2060 = vld [vmem:[#allocation14 + $0x20] sm:$0xf]
          %v2061 = vld [vmem:[#allocation14 + $0x24] sm:$0xf]
          %v2062 = vld [vmem:[#allocation14 + $0x28] sm:$0xf]
          %v2063 = vld [vmem:[#allocation14 + $0x2c] sm:$0xf]
          %v2064 = vld [vmem:[#allocation14 + $0x30] sm:$0xf]
          %v2065 = vld [vmem:[#allocation14 + $0x34] sm:$0xf]
          %v2066 = vld [vmem:[#allocation14 + $0x38] sm:$0xf]
          %v2067 = vld [vmem:[#allocation14 + $0x3c] sm:$0xf]
          %v2068 = vld [vmem:[#allocation14 + $0x40] sm:$0xf]
          %v2069 = vld [vmem:[#allocation14 + $0x44] sm:$0xf]
          %v2070 = vld [vmem:[#allocation14 + $0x48] sm:$0xf]
          %v2071 = vld [vmem:[#allocation14 + $0x4c] sm:$0xf]
          %v2072 = vld [vmem:[#allocation14 + $0x50] sm:$0xf]
          %v2073 = vld [vmem:[#allocation14 + $0x54] sm:$0xf]
          %v2074 = vld [vmem:[#allocation14 + $0x58] sm:$0xf]
          %v2075 = vld [vmem:[#allocation14 + $0x5c] sm:$0xf]
          %v2076 = vld [vmem:[#allocation14 + $0x60] sm:$0xf]
          %v2077 = vld [vmem:[#allocation14 + $0x64] sm:$0xf]
          %v2078 = vld [vmem:[#allocation14 + $0x68] sm:$0xf]
          %v2079 = vld [vmem:[#allocation14 + $0x6c] sm:$0xf]
          %v2080 = vld [vmem:[#allocation14 + $0x70] sm:$0xf]
          %v2081 = vld [vmem:[#allocation14 + $0x74] sm:$0xf]
          %v2082 = vld [vmem:[#allocation14 + $0x78] sm:$0xf]
          %v2083 = vld [vmem:[#allocation14 + $0x7c] sm:$0xf]
          %v2084 = vld [vmem:[#allocation14 + $0x80] sm:$0xf]
          %v2085 = vld [vmem:[#allocation14 + $0x84] sm:$0xf]
          %v2086 = vld [vmem:[#allocation14 + $0x88] sm:$0xf]
          %v2087 = vld [vmem:[#allocation14 + $0x8c] sm:$0xf]
          %v2088 = vld [vmem:[#allocation14 + $0x90] sm:$0xf]
          %v2089 = vld [vmem:[#allocation14 + $0x94] sm:$0xf]
          %v2090 = vld [vmem:[#allocation14 + $0x98] sm:$0xf]
          %v2091 = vld [vmem:[#allocation14 + $0x9c] sm:$0xf]
          %v2092 = vld [vmem:[#allocation14 + $0xa0] sm:$0xf]
          %v2093 = vld [vmem:[#allocation14 + $0xa4] sm:$0xf]
          %v2094 = vld [vmem:[#allocation14 + $0xa8] sm:$0xf]
          %v2095 = vld [vmem:[#allocation14 + $0xac] sm:$0xf]
          %v2096 = vld [vmem:[#allocation14 + $0xb0] sm:$0xf]
          %v2097 = vld [vmem:[#allocation14 + $0xb4] sm:$0xf]
          %v2098 = vld [vmem:[#allocation14 + $0xb8] sm:$0xf]
          %v2099 = vld [vmem:[#allocation14 + $0xbc] sm:$0xf]
          %v2100 = vld [vmem:[#allocation14 + $0xc0] sm:$0xf]
          %v2101 = vld [vmem:[#allocation14 + $0xc4] sm:$0xf]
          %v2102 = vld [vmem:[#allocation14 + $0xc8] sm:$0xf]
          %v2103 = vld [vmem:[#allocation14 + $0xcc] sm:$0xf]
          %v2104 = vld [vmem:[#allocation14 + $0xd0] sm:$0xf]
          %v2105 = vld [vmem:[#allocation14 + $0xd4] sm:$0xf]
          %v2106 = vld [vmem:[#allocation14 + $0xd8] sm:$0xf]
          %v2107 = vld [vmem:[#allocation14 + $0xdc] sm:$0xf]
          %v2108 = vld [vmem:[#allocation14 + $0xe0] sm:$0xf]
          %v2109 = vld [vmem:[#allocation14 + $0xe4] sm:$0xf]
          %v2110 = vld [vmem:[#allocation14 + $0xe8] sm:$0xf]
          %v2111 = vld [vmem:[#allocation14 + $0xec] sm:$0xf]
          %v2112 = vld [vmem:[#allocation14 + $0xf0] sm:$0xf]
          %v2113 = vld [vmem:[#allocation14 + $0xf4] sm:$0xf]
          %v2114 = vld [vmem:[#allocation14 + $0xf8] sm:$0xf]
          %v2115 = vld [vmem:[#allocation14 + $0xfc] sm:$0xf]
          %v2180 = vunpack.c.l.b16 %v2052
          %v2181 = vunpack.c.l.b16 %v2053
          %v2182 = vunpack.c.l.b16 %v2054
          %v2183 = vunpack.c.l.b16 %v2055
          %v2184 = vunpack.c.l.b16 %v2056
          %v2185 = vunpack.c.l.b16 %v2057
          %v2186 = vunpack.c.l.b16 %v2058
          %v2187 = vunpack.c.l.b16 %v2059
          %v2188 = vunpack.c.l.b16 %v2060
          %v2189 = vunpack.c.l.b16 %v2061
          %v2190 = vunpack.c.l.b16 %v2062
          %v2191 = vunpack.c.l.b16 %v2063
          %v2192 = vunpack.c.l.b16 %v2064
          %v2193 = vunpack.c.l.b16 %v2065
          %v2194 = vunpack.c.l.b16 %v2066
          %v2195 = vunpack.c.l.b16 %v2067
          %v2196 = vunpack.c.l.b16 %v2068
          %v2197 = vunpack.c.l.b16 %v2069
          %v2198 = vunpack.c.l.b16 %v2070
          %v2199 = vunpack.c.l.b16 %v2071
          %v2200 = vunpack.c.l.b16 %v2072
          %v2201 = vunpack.c.l.b16 %v2073
          %v2202 = vunpack.c.l.b16 %v2074
          %v2203 = vunpack.c.l.b16 %v2075
          %v2204 = vunpack.c.l.b16 %v2076
          %v2205 = vunpack.c.l.b16 %v2077
          %v2206 = vunpack.c.l.b16 %v2078
          %v2207 = vunpack.c.l.b16 %v2079
          %v2208 = vunpack.c.l.b16 %v2080
          %v2209 = vunpack.c.l.b16 %v2081
          %v2210 = vunpack.c.l.b16 %v2082
          %v2211 = vunpack.c.l.b16 %v2083
          %v2212 = vunpack.c.l.b16 %v2084
          %v2213 = vunpack.c.l.b16 %v2085
          %v2214 = vunpack.c.l.b16 %v2086
          %v2215 = vunpack.c.l.b16 %v2087
          %v2216 = vunpack.c.l.b16 %v2088
          %v2217 = vunpack.c.l.b16 %v2089
          %v2218 = vunpack.c.l.b16 %v2090
          %v2219 = vunpack.c.l.b16 %v2091
          %v2220 = vunpack.c.l.b16 %v2092
          %v2221 = vunpack.c.l.b16 %v2093
          %v2222 = vunpack.c.l.b16 %v2094
          %v2223 = vunpack.c.l.b16 %v2095
          %v2224 = vunpack.c.l.b16 %v2096
          %v2225 = vunpack.c.l.b16 %v2097
          %v2226 = vunpack.c.l.b16 %v2098
          %v2227 = vunpack.c.l.b16 %v2099
          %v2228 = vunpack.c.l.b16 %v2100
          %v2229 = vunpack.c.l.b16 %v2101
          %v2230 = vunpack.c.l.b16 %v2102
          %v2231 = vunpack.c.l.b16 %v2103
          %v2232 = vunpack.c.l.b16 %v2104
          %v2233 = vunpack.c.l.b16 %v2105
          %v2234 = vunpack.c.l.b16 %v2106
          %v2235 = vunpack.c.l.b16 %v2107
          %v2236 = vunpack.c.l.b16 %v2108
          %v2237 = vunpack.c.l.b16 %v2109
          %v2238 = vunpack.c.l.b16 %v2110
          %v2239 = vunpack.c.l.b16 %v2111
          %v2240 = vunpack.c.l.b16 %v2112
          %v2241 = vunpack.c.l.b16 %v2113
          %v2242 = vunpack.c.l.b16 %v2114
          %v2243 = vunpack.c.l.b16 %v2115
          %v2244 = vpack.c.b16 %v2181, %v2180
          %v2245 = vpack.c.b16 %v2183, %v2182
          %v2246 = vpack.c.b16 %v2185, %v2184
          %v2247 = vpack.c.b16 %v2187, %v2186
          %v2248 = vpack.c.b16 %v2189, %v2188
          %v2249 = vpack.c.b16 %v2191, %v2190
          %v2250 = vpack.c.b16 %v2193, %v2192
          %v2251 = vpack.c.b16 %v2195, %v2194
          %v2252 = vpack.c.b16 %v2197, %v2196
          %v2253 = vpack.c.b16 %v2199, %v2198
          %v2254 = vpack.c.b16 %v2201, %v2200
          %v2255 = vpack.c.b16 %v2203, %v2202
          %v2256 = vpack.c.b16 %v2205, %v2204
          %v2257 = vpack.c.b16 %v2207, %v2206
          %v2258 = vpack.c.b16 %v2209, %v2208
          %v2259 = vpack.c.b16 %v2211, %v2210
          %v2260 = vpack.c.b16 %v2213, %v2212
          %v2261 = vpack.c.b16 %v2215, %v2214
          %v2262 = vpack.c.b16 %v2217, %v2216
          %v2263 = vpack.c.b16 %v2219, %v2218
          %v2264 = vpack.c.b16 %v2221, %v2220
          %v2265 = vpack.c.b16 %v2223, %v2222
          %v2266 = vpack.c.b16 %v2225, %v2224
          %v2267 = vpack.c.b16 %v2227, %v2226
          %v2268 = vpack.c.b16 %v2229, %v2228
          %v2269 = vpack.c.b16 %v2231, %v2230
          %v2270 = vpack.c.b16 %v2233, %v2232
          %v2271 = vpack.c.b16 %v2235, %v2234
          %v2272 = vpack.c.b16 %v2237, %v2236
          %v2273 = vpack.c.b16 %v2239, %v2238
          %v2274 = vpack.c.b16 %v2241, %v2240
          %v2275 = vpack.c.b16 %v2243, %v2242
          %2308 = vmatprep.subr.bf16.mxu0 0
          %2309 = vmatpush1.bf16.msra.mxu0 %v2244
          %2310 = vmatprep.subr.bf16.mxu0 0
          %2311 = vmatpush1.bf16.msra.mxu0 %v2245
          %2312 = vmatprep.subr.bf16.mxu0 0
          %2313 = vmatpush1.bf16.msra.mxu0 %v2246
          %2314 = vmatprep.subr.bf16.mxu0 0
          %2315 = vmatpush1.bf16.msra.mxu0 %v2247
          %2316 = vmatprep.subr.bf16.mxu0 0
          %2317 = vmatpush1.bf16.msra.mxu0 %v2248
          %2318 = vmatprep.subr.bf16.mxu0 0
          %2319 = vmatpush1.bf16.msra.mxu0 %v2249
          %2320 = vmatprep.subr.bf16.mxu0 0
          %2321 = vmatpush1.bf16.msra.mxu0 %v2250
          %2322 = vmatprep.subr.bf16.mxu0 0
          %2323 = vmatpush1.bf16.msra.mxu0 %v2251
          %2324 = vmatprep.subr.bf16.mxu0 0
          %2325 = vmatpush1.bf16.msra.mxu0 %v2252
          %2326 = vmatprep.subr.bf16.mxu0 0
          %2327 = vmatpush1.bf16.msra.mxu0 %v2253
          %2328 = vmatprep.subr.bf16.mxu0 0
          %2329 = vmatpush1.bf16.msra.mxu0 %v2254
          %2330 = vmatprep.subr.bf16.mxu0 0
          %2331 = vmatpush1.bf16.msra.mxu0 %v2255
          %2332 = vmatprep.subr.bf16.mxu0 0
          %2333 = vmatpush1.bf16.msra.mxu0 %v2256
          %2334 = vmatprep.subr.bf16.mxu0 0
          %2335 = vmatpush1.bf16.msra.mxu0 %v2257
          %2336 = vmatprep.subr.bf16.mxu0 0
          %2337 = vmatpush1.bf16.msra.mxu0 %v2258
          %2338 = vmatprep.subr.bf16.mxu0 0
          %2339 = vmatpush1.bf16.msra.mxu0 %v2259
          %2340 = vmatprep.mubr.bf16.mxu0 %v2049
          %2341 = vmatmul.mubr.bf16.gmra.mrb[0].mxu0 %v2048
          %v2342 = vpop.f32.mrb[0].mxu0
          %v2343 = vadd.f32 0.0, %v2342
          %v2344 = vpop.f32.mrb[0].mxu0
          %v2345 = vpop.f32.mrb[0].mxu0
          %v2346 = vadd.f32 0.0, %v2345
          %v2347 = vpop.f32.mrb[0].mxu0
          %2348 = vdwg.mxu0
          %2349 = vmatprep.subr.bf16.mxu0 0
          %2350 = vmatpush1.bf16.msra.mxu0 %v2260
          %2351 = vmatprep.subr.bf16.mxu0 0
          %2352 = vmatpush1.bf16.msra.mxu0 %v2261
          %2353 = vmatprep.subr.bf16.mxu0 0
          %2354 = vmatpush1.bf16.msra.mxu0 %v2262
          %2355 = vmatprep.subr.bf16.mxu0 0
          %2356 = vmatpush1.bf16.msra.mxu0 %v2263
          %2357 = vmatprep.subr.bf16.mxu0 0
          %2358 = vmatpush1.bf16.msra.mxu0 %v2264
          %2359 = vmatprep.subr.bf16.mxu0 0
          %2360 = vmatpush1.bf16.msra.mxu0 %v2265
          %2361 = vmatprep.subr.bf16.mxu0 0
          %2362 = vmatpush1.bf16.msra.mxu0 %v2266
          %2363 = vmatprep.subr.bf16.mxu0 0
          %2364 = vmatpush1.bf16.msra.mxu0 %v2267
          %2365 = vmatprep.subr.bf16.mxu0 0
          %2366 = vmatpush1.bf16.msra.mxu0 %v2268
          %2367 = vmatprep.subr.bf16.mxu0 0
          %2368 = vmatpush1.bf16.msra.mxu0 %v2269
          %2369 = vmatprep.subr.bf16.mxu0 0
          %2370 = vmatpush1.bf16.msra.mxu0 %v2270
          %2371 = vmatprep.subr.bf16.mxu0 0
          %2372 = vmatpush1.bf16.msra.mxu0 %v2271
          %2373 = vmatprep.subr.bf16.mxu0 0
          %2374 = vmatpush1.bf16.msra.mxu0 %v2272
          %2375 = vmatprep.subr.bf16.mxu0 0
          %2376 = vmatpush1.bf16.msra.mxu0 %v2273
          %2377 = vmatprep.subr.bf16.mxu0 0
          %2378 = vmatpush1.bf16.msra.mxu0 %v2274
          %2379 = vmatprep.subr.bf16.mxu0 0
          %2380 = vmatpush1.bf16.msra.mxu0 %v2275
          %2381 = vmatprep.mubr.bf16.mxu0 %v2051
          %2382 = vmatmul.mubr.bf16.gmra.mrb[0].mxu0 %v2050
          %v2383 = vpop.f32.mrb[0].mxu0
          %v2384 = vadd.f32 %v2343, %v2383
          %v2385 = vpop.f32.mrb[0].mxu0
          %v2386 = vpop.f32.mrb[0].mxu0
          %v2387 = vadd.f32 %v2346, %v2386
          %v2388 = vpop.f32.mrb[0].mxu0
          %2389 = vdwg.mxu0
          %v2390 = vadd.f32 %v1674, %v2384
          %v2391 = vadd.f32 %v1675, %v2387
          %v2392 = vld [vmem:[%s12] sm:$0x1]
          %v2393 = vld [vmem:[%s13] sm:$0x1]
          %2394 = vadd.xlane.f32.xlu0 %v2390
          %v2395 = vpop.xlane.xlu0 %2394
          %2396 = vadd.xlane.f32.xlu0 %v2391
          %v2397 = vpop.xlane.xlu0 %2396
          %v2398 = vmul.f32 %v2395, %v1631
          %v2399 = vmul.f32 %v2397, %v1631
          %v2400 = vsub.f32 %v2390, %v2398
          %v2401 = vsub.f32 %v2391, %v2399
          %v2402 = vmul.f32 %v2400, %v2400
          %v2403 = vmul.f32 %v2401, %v2401
          %2404 = vadd.xlane.f32.xlu0 %v2402
          %v2405 = vpop.xlane.xlu0 %2404
          %2406 = vadd.xlane.f32.xlu0 %v2403
          %v2407 = vpop.xlane.xlu0 %2406
          %v2408 = vmul.f32 %v2405, %v1631
          %v2409 = vmul.f32 %v2407, %v1631
          %v2410 = vadd.f32 %v2408, 1e-12
          %v2411 = vadd.f32 %v2409, 1e-12
          %v2412 = vrsqrt.pop %v2410
          %v2413 = vrsqrt.pop %v2411
          %v2414 = vmul.f32 %v2400, %v2412
          %v2415 = vmul.f32 %v2401, %v2413
          %v2417 = vlaneseq
          %v2418 = vshrl.u32 %v2417, 7
          %v2419 = vsub.s32 0, %v2418
          %v2420 = vrot.slane %v2392, %v2419
          %v2422 = vmul.f32 %v2414, %v2420
          %v2423 = vmul.f32 %v2415, %v2420
          %v2425 = vlaneseq
          %v2426 = vshrl.u32 %v2425, 7
          %v2427 = vsub.s32 0, %v2426
          %v2428 = vrot.slane %v2393, %v2427
          %v2430 = vadd.f32 %v2422, %v2428
          %v2431 = vadd.f32 %v2423, %v2428
          %2432 = vst [vmem:[%s716] sm:$0xff] %v2430
          %2433 = vst [vmem:[%s716 + $0x8] sm:$0xff] %v2431
        $region116: #{tpu_custom_call.1} parent=75 // pred_fallthru
          _
        %s2434 = sand.u32 %s396, 1
        %s2435 = scalar_lea.sflag [#allocation5], %s2434
        %s2436 = sand.u32 %s396, 1
        %s2437 = smul.addr %s2436, 16
        %s2438 = scalar_lea.vmem [#allocation15], %s2437
        // Predicated region
        $region117: #{tpu_custom_call.1} parent=75 // pred_check
          %p2439 = pneg %p406
        $region118: #{tpu_custom_call.1} parent=75 // pred_check_branch
          %2441 = sbr.rel (%p2439) target = $region120
        $region119: #{tpu_custom_call.1} parent=75 // pred_region
          %s2442 = smul.u32 2, %s44
          %s2444 = ssub.s32 256, 256
          %2445 = vsyncadd %s2435, %s2444
          %s2446 = smul.addr %s43, 4
          %s2447 = sadd.s32 %s2442, %s2446
          %s2448 = smul.addr %s2447, 128
          %s2449 = scalar_lea.hbm %s14, %s2448
          %s2450 = sshll.u32 %s2438, 4
          %s2451 = int_to_ptr.vmem [resolvable:$true] %s2450
          %2456 = dma.vmem_to_hbm [thread:$0]  %s2451, 256, %s2449, %s2435, 128, 128, 8
        $region120: #{tpu_custom_call.1} parent=75 // pred_fallthru
          _
      $region76: #{tpu_custom_call.1} parent=5 // pred_fallthru
        _
      %p2457 = scmp.le.s32.totalorder 2, %s33
      // Predicated region
      $region121: #{tpu_custom_call.1} parent=5 // pred_check
        %p2458 = pneg %p2457
      $region122: #{tpu_custom_call.1} parent=5 // pred_check_branch
        %2460 = sbr.rel (%p2458) target = $region124
      $region123: #{tpu_custom_call.1} parent=5 // pred_region
        %s2461 = ssub.s32 %s33, 2
        // Predicated region
        $region125: #{tpu_custom_call.1} parent=123 // pred_check
          %p2462 = pneg %p412
        $region126: #{tpu_custom_call.1} parent=123 // pred_check_branch
          %2464 = sbr.rel (%p2462) target = $region128
        $region127: #{tpu_custom_call.1} parent=123 // pred_region
          %s2465 = sand.u32 %s397, 1
          %s2466 = scalar_lea.sflag [#allocation5], %s2465
          %s2467 = sand.u32 %s397, 1
          %s2468 = smul.addr %s2467, 16
          %s2469 = scalar_lea.vmem [#allocation15], %s2468
          %2470 = dma.done %s2466, 256
        $region128: #{tpu_custom_call.1} parent=123 // pred_fallthru
          _
      $region124: #{tpu_custom_call.1} parent=5 // pred_fallthru
        _
    $region6: #{tpu_custom_call.1} parent=1 // loop_footer
      %s37 = sadd.s32 1, %s33
    $region7: #{tpu_custom_call.1} parent=1 // loop_footer_branch
      %32 = sbr.rel target = $region3
    $region8: #{tpu_custom_call.1} parent=1 // loop_exit
      _
    %2471 = vsyncpa [#allocation4], 1
    %s2472 = scalar_lea.sflag [#allocation4], 1
    %2473 = vsyncpa %s2472, 1
    %2474 = vsyncpa [#allocation7], 1
    %s2475 = scalar_lea.sflag [#allocation7], 1
    %2476 = vsyncpa %s2475, 1
    %2477 = vsyncpa [#allocation10], 1
    %s2478 = scalar_lea.sflag [#allocation10], 1
    %2479 = vsyncpa %s2478, 1
    %2480 = vsyncpa [#allocation13], 1
    %2481 = vsyncpa [#allocation5], 1
    %s2482 = scalar_lea.sflag [#allocation5], 1
    %2483 = vsyncpa %s2482, 1

</llo_original>
